<compile_context>
chip_gen: v7x
topology: tpu7x:2x2x1
jax: 0.10.0
libtpu: 0.0.40
codegen_flags: <defaults>
</compile_context>

<pallas_src>
import jax
import jax.numpy as jnp
import numpy as np
from jax.experimental import pallas as pl
from jax.experimental.pallas import tpu as pltpu

N_HIDDEN = 30          # fixed by MV_LSTM.__init__
HP = 32                # lane-padded hidden size (4*HP = 128 lanes)
N_OUT = 2              # fixed by MV_LSTM.__init__ (Linear(..., 2))
OUT_PAD = 128          # lane-dense head output width (sliced to 2 in wrapper)


def _pad_gates(w):
    """Pad the trailing 4*30 gate axis to 4*32 (zero pad inside each gate)."""
    lead = w.shape[:-1]
    w4 = w.reshape(lead + (4, N_HIDDEN))
    w4 = jnp.pad(w4, [(0, 0)] * len(lead) + [(0, 0), (0, HP - N_HIDDEN)])
    return w4.reshape(lead + (4 * HP,))


def _make_kernel(T, B):
    G = 4 * HP  # 128

    def kernel(x_ref, wih0_ref, whh0_ref, b0_ref, wih1_ref, whh1_ref, b1_ref,
               wlin_ref, blin_ref, out_ref, xp):
        # -- prologue: layer-0 input projection for ALL timesteps at once --
        # (no recurrence -> off the serial chain; bias folded in for free)
        proj = jnp.dot(x_ref[...], wih0_ref[...],
                       preferred_element_type=jnp.float32)
        xp[...] = proj.reshape(T, B, G) + b0_ref[...]

        # hoist loop-invariant loads / broadcasts out of the unrolled loop
        whh0 = whh0_ref[...]              # (HP, 128) bf16
        wih1 = wih1_ref[...]              # (HP, 128) bf16
        whh1 = whh1_ref[...]              # (HP, 128) bf16
        b1 = jnp.broadcast_to(b1_ref[...], (B, G))

        # init_hidden(): zero hidden/cell state, carried as values (vregs)
        zeros = jnp.zeros((B, HP), jnp.float32)
        h0, c0, h1, c1 = zeros, zeros, zeros, zeros

        def lstm_gates(z, c_prev):        # z: (B, 128), gate order [i, f, g, o]
            # one full-vreg sigmoid + one full-vreg tanh (2 EUP pushes), then
            # slice the gates out -- padded lanes provably stay 0 in h/c.
            sig = jax.nn.sigmoid(z)
            tnh = jnp.tanh(z)
            i = sig[:, 0 * HP:1 * HP]
            f = sig[:, 1 * HP:2 * HP]
            g = tnh[:, 2 * HP:3 * HP]
            o = sig[:, 3 * HP:4 * HP]
            c_new = f * c_prev + i * g
            h_new = o * jnp.tanh(c_new)
            return h_new, c_new

        # Statically unrolled recurrence (T small & static) so the LLO
        # scheduler can overlap independent work across adjacent steps.
        h1_hist = []
        for t in range(T):
            # ---- layer-1 recurrent half: depends only on h1_{t-1}, so it
            #      overlaps with layer-0's matmul + gate math below ----
            z1_rec = jnp.dot(h1.astype(jnp.bfloat16), whh1,
                             preferred_element_type=jnp.float32)

            # ---- layer 0: only the recurrent matmul is on the chain ----
            z0 = xp[t] + jnp.dot(h0.astype(jnp.bfloat16), whh0,
                                 preferred_element_type=jnp.float32)
            h0, c0 = lstm_gates(z0, c0)

            # ---- layer 1: input half once h0_t is ready ----
            z1 = (jnp.dot(h0.astype(jnp.bfloat16), wih1,
                          preferred_element_type=jnp.float32)
                  + z1_rec + b1)
            h1, c1 = lstm_gates(z1, c1)
            h1_hist.append(h1)

        # ---- deferred linear head: one matmul after the recurrence,
        #      lane-dense (B, 128) output -> unmasked store ----
        hist = jnp.concatenate(h1_hist, axis=1)           # (B, T*HP)
        out_ref[...] = (jnp.dot(hist, wlin_ref[...],
                                preferred_element_type=jnp.float32)
                        + blin_ref[...])

    return kernel


def mv_lstm_forward(x, params):
    """x: (B, T, F) float32, batch_first like the PyTorch module."""
    B, T, F = x.shape
    pad_h = HP - N_HIDDEN
    G = 4 * HP

    # time-major, flattened to (T*B, F): row t*B + b is timestep t, batch b.
    x_flat = jnp.transpose(x, (1, 0, 2)).reshape(T * B, F).astype(jnp.float32)

    # layer 0 (input projection stays f32 -- it is off the serial chain)
    wih0 = _pad_gates(params['w_ih_l0'].T)                                # (F, 128)
    whh0 = jnp.pad(_pad_gates(params['w_hh_l0'].T),
                   ((0, pad_h), (0, 0))).astype(jnp.bfloat16)             # (32, 128)
    b0 = _pad_gates(params['b_ih_l0'] + params['b_hh_l0']).reshape(1, G)
    # layer 1 (two separate recurrent weight mats, bf16 for single-pass MXU)
    wih1 = jnp.pad(_pad_gates(params['w_ih_l1'].T),
                   ((0, pad_h), (0, 0))).astype(jnp.bfloat16)             # (32, 128)
    whh1 = jnp.pad(_pad_gates(params['w_hh_l1'].T),
                   ((0, pad_h), (0, 0))).astype(jnp.bfloat16)             # (32, 128)
    b1 = _pad_gates(params['b_ih_l1'] + params['b_hh_l1']).reshape(1, G)
    # head: rows t*HP + h of wlin multiply hist[:, t*HP + h]; padded rows = 0;
    # output columns padded 2 -> 128 for a lane-dense store.
    wlin = params['w_lin'].T.reshape(T, N_HIDDEN, N_OUT)
    wlin = jnp.pad(wlin, ((0, 0), (0, pad_h), (0, 0))).reshape(T * HP, N_OUT)
    wlin = jnp.pad(wlin, ((0, 0), (0, OUT_PAD - N_OUT)))                  # (T*HP, 128)
    blin = jnp.pad(params['b_lin'].reshape(1, N_OUT),
                   ((0, 0), (0, OUT_PAD - N_OUT)))                        # (1, 128)

    args = (x_flat, wih0, whh0, b0, wih1, whh1, b1, wlin, blin)
    vmem = pl.BlockSpec(memory_space=pltpu.MemorySpace.VMEM)

    # NOTE: for large B on v7x a batch grid axis with
    # dimension_semantics=("parallel",) would engage the second TensorCore;
    # at B=8 it would be pure overhead, so the kernel stays single-invocation.
    out_padded = pl.pallas_call(
        _make_kernel(T, B),
        out_shape=jax.ShapeDtypeStruct((B, OUT_PAD), jnp.float32),
        in_specs=[vmem] * len(args),
        out_specs=vmem,
        scratch_shapes=[
            pltpu.VMEM((T, B, G), jnp.float32),   # xp (layer-0 input proj)
        ],
    )(*args)
    return out_padded[:, :N_OUT]


def reference_forward(x, params):
    """Pure-JAX replica of the PyTorch forward (for verification)."""
    B, T, _ = x.shape
    H = N_HIDDEN

    def lstm_layer(inp, w_ih, w_hh, b_ih, b_hh):
        h = jnp.zeros((B, H), jnp.float32)
        c = jnp.zeros((B, H), jnp.float32)
        outs = []
        for t in range(T):
            z = inp[:, t, :] @ w_ih.T + h @ w_hh.T + b_ih + b_hh
            i = jax.nn.sigmoid(z[:, :H])
            f = jax.nn.sigmoid(z[:, H:2 * H])
            g = jnp.tanh(z[:, 2 * H:3 * H])
            o = jax.nn.sigmoid(z[:, 3 * H:])
            c = f * c + i * g
            h = o * jnp.tanh(c)
            outs.append(h)
        return jnp.stack(outs, axis=1)

    y0 = lstm_layer(x, params['w_ih_l0'], params['w_hh_l0'],
                    params['b_ih_l0'], params['b_hh_l0'])
    y1 = lstm_layer(y0, params['w_ih_l1'], params['w_hh_l1'],
                    params['b_ih_l1'], params['b_hh_l1'])
    flat = y1.reshape(B, T * H)
    return flat @ params['w_lin'].T + params['b_lin']


if __name__ == "__main__":
    # Small shapes consistent with the module: batch=8, seq=8, features=32.
    B, T, F = 8, 8, 32
    H = N_HIDDEN

    key = jax.random.PRNGKey(0)
    keys = jax.random.split(key, 11)
    bound = 1.0 / np.sqrt(H)

    def u(k, shape):
        return jax.random.uniform(k, shape, jnp.float32, -bound, bound)

    params = {
        'w_ih_l0': u(keys[0], (4 * H, F)),
        'w_hh_l0': u(keys[1], (4 * H, H)),
        'b_ih_l0': u(keys[2], (4 * H,)),
        'b_hh_l0': u(keys[3], (4 * H,)),
        'w_ih_l1': u(keys[4], (4 * H, H)),
        'w_hh_l1': u(keys[5], (4 * H, H)),
        'b_ih_l1': u(keys[6], (4 * H,)),
        'b_hh_l1': u(keys[7], (4 * H,)),
        'w_lin':   u(keys[8], (N_OUT, T * H)),
        'b_lin':   u(keys[9], (N_OUT,)),
    }
    x = jax.random.normal(keys[10], (B, T, F), jnp.float32)

    out = jax.block_until_ready(mv_lstm_forward(x, params))
    ref = reference_forward(x, params)
    # tolerance relaxed vs the pure-f32 version: the three recurrent dots per
    # step now run with bf16 operands (f32 accumulation).
    np.testing.assert_allclose(np.asarray(out), np.asarray(ref),
                               atol=2e-2, rtol=2e-2)
    print("KERNEL_OK")
</pallas_src>

<mosaic_0001>
module attributes {stable_mosaic.version = 11 : i64} {
  func.func @kernel(%arg0: memref<64x32xf32, #tpu.memory_space<vmem>>, %arg1: memref<32x128xf32, #tpu.memory_space<vmem>>, %arg2: memref<32x128xbf16, #tpu.memory_space<vmem>>, %arg3: memref<1x128xf32, #tpu.memory_space<vmem>>, %arg4: memref<32x128xbf16, #tpu.memory_space<vmem>>, %arg5: memref<32x128xbf16, #tpu.memory_space<vmem>>, %arg6: memref<1x128xf32, #tpu.memory_space<vmem>>, %arg7: memref<256x128xf32, #tpu.memory_space<vmem>>, %arg8: memref<1x128xf32, #tpu.memory_space<vmem>>, %arg9: memref<8x128xf32, #tpu.memory_space<vmem>>, %arg10: memref<8x8x128xf32, #tpu.memory_space<vmem>>) attributes {dimension_semantics = [], scalar_prefetch = 0 : i64, scratch_operands = 1 : i64, tpu.core_type = #tpu.core_type<tc>} {
    %c0 = arith.constant 0 : index
    %c0_0 = arith.constant 0 : index
    %0 = vector.load %arg0[%c0, %c0_0] : memref<64x32xf32, #tpu.memory_space<vmem>>, vector<64x32xf32>
    %c0_1 = arith.constant 0 : index
    %c0_2 = arith.constant 0 : index
    %1 = vector.load %arg1[%c0_1, %c0_2] : memref<32x128xf32, #tpu.memory_space<vmem>>, vector<32x128xf32>
    %cst = arith.constant dense<0.000000e+00> : vector<64x128xf32>
    %2 = tpu.matmul %0, %1, %cst {dimension_numbers = #tpu.dot_dimension_numbers<[1], [0], [0], [1], [0, 0, 1, 1], [], []>} : vector<64x32xf32>, vector<32x128xf32>, vector<64x128xf32> -> vector<64x128xf32>
    %3 = vector.shape_cast %2 : vector<64x128xf32> to vector<8x8x128xf32>
    %c0_3 = arith.constant 0 : index
    %c0_4 = arith.constant 0 : index
    %4 = vector.load %arg3[%c0_3, %c0_4] : memref<1x128xf32, #tpu.memory_space<vmem>>, vector<1x128xf32>
    %5 = vector.shape_cast %4 : vector<1x128xf32> to vector<1x1x128xf32>
    %6 = vector.broadcast %5 : vector<1x1x128xf32> to vector<8x8x128xf32>
    %7 = arith.addf %3, %6 : vector<8x8x128xf32>
    %c0_5 = arith.constant 0 : index
    %c0_6 = arith.constant 0 : index
    %c0_7 = arith.constant 0 : index
    %8 = vector.load %arg10[%c0_5, %c0_6, %c0_7] : memref<8x8x128xf32, #tpu.memory_space<vmem>>, vector<8x8x128xf32>
    tpu.vector_store %arg10[%c0_5, %c0_6, %c0_7], %7 {strides = array<i32>} : memref<8x8x128xf32, #tpu.memory_space<vmem>>, vector<8x8x128xf32>,
    %c0_8 = arith.constant 0 : index
    %c0_9 = arith.constant 0 : index
    %9 = vector.load %arg2[%c0_8, %c0_9] : memref<32x128xbf16, #tpu.memory_space<vmem>>, vector<32x128xbf16>
    %c0_10 = arith.constant 0 : index
    %c0_11 = arith.constant 0 : index
    %10 = vector.load %arg4[%c0_10, %c0_11] : memref<32x128xbf16, #tpu.memory_space<vmem>>, vector<32x128xbf16>
    %c0_12 = arith.constant 0 : index
    %c0_13 = arith.constant 0 : index
    %11 = vector.load %arg5[%c0_12, %c0_13] : memref<32x128xbf16, #tpu.memory_space<vmem>>, vector<32x128xbf16>
    %c0_14 = arith.constant 0 : index
    %c0_15 = arith.constant 0 : index
    %12 = vector.load %arg6[%c0_14, %c0_15] : memref<1x128xf32, #tpu.memory_space<vmem>>, vector<1x128xf32>
    %13 = vector.shape_cast %12 : vector<1x128xf32> to vector<1x128xf32>
    %14 = vector.broadcast %13 : vector<1x128xf32> to vector<8x128xf32>
    %cst_16 = arith.constant 0.000000e+00 : f32
    %15 = vector.broadcast %cst_16 : f32 to vector<8x32xf32>
    %16 = arith.truncf %15 : vector<8x32xf32> to vector<8x32xbf16>
    %cst_17 = arith.constant dense<0.000000e+00> : vector<8x128xf32>
    %17 = tpu.matmul %16, %11, %cst_17 {dimension_numbers = #tpu.dot_dimension_numbers<[1], [0], [0], [1], [0, 0, 1, 1], [], []>} : vector<8x32xbf16>, vector<32x128xbf16>, vector<8x128xf32> -> vector<8x128xf32>
    %c0_18 = arith.constant 0 : index
    %c0_19 = arith.constant 0 : index
    %c0_20 = arith.constant 0 : index
    %18 = vector.load %arg10[%c0_18, %c0_19, %c0_20] : memref<8x8x128xf32, #tpu.memory_space<vmem>>, vector<1x8x128xf32>
    %19 = vector.shape_cast %18 : vector<1x8x128xf32> to vector<8x128xf32>
    %20 = arith.truncf %15 : vector<8x32xf32> to vector<8x32xbf16>
    %cst_21 = arith.constant dense<0.000000e+00> : vector<8x128xf32>
    %21 = tpu.matmul %20, %9, %cst_21 {dimension_numbers = #tpu.dot_dimension_numbers<[1], [0], [0], [1], [0, 0, 1, 1], [], []>} : vector<8x32xbf16>, vector<32x128xbf16>, vector<8x128xf32> -> vector<8x128xf32>
    %22 = arith.addf %19, %21 : vector<8x128xf32>
    %23 = arith.negf %22 : vector<8x128xf32>
    %24 = math.exp %23 : vector<8x128xf32>
    %cst_22 = arith.constant 1.000000e+00 : f32
    %25 = vector.broadcast %cst_22 : f32 to vector<8x128xf32>
    %26 = arith.addf %25, %24 : vector<8x128xf32>
    %27 = arith.divf %25, %26 : vector<8x128xf32>
    %28 = math.tanh %22 : vector<8x128xf32>
    %29 = vector.extract_strided_slice %27 {offsets = [0, 0], sizes = [8, 32], strides = [1, 1]} : vector<8x128xf32> to vector<8x32xf32>
    %30 = vector.extract_strided_slice %27 {offsets = [0, 32], sizes = [8, 32], strides = [1, 1]} : vector<8x128xf32> to vector<8x32xf32>
    %31 = vector.extract_strided_slice %28 {offsets = [0, 64], sizes = [8, 32], strides = [1, 1]} : vector<8x128xf32> to vector<8x32xf32>
    %32 = vector.extract_strided_slice %27 {offsets = [0, 96], sizes = [8, 32], strides = [1, 1]} : vector<8x128xf32> to vector<8x32xf32>
    %33 = arith.mulf %30, %15 : vector<8x32xf32>
    %34 = arith.mulf %29, %31 : vector<8x32xf32>
    %35 = arith.addf %33, %34 : vector<8x32xf32>
    %36 = math.tanh %35 : vector<8x32xf32>
    %37 = arith.mulf %32, %36 : vector<8x32xf32>
    %38 = arith.truncf %37 : vector<8x32xf32> to vector<8x32xbf16>
    %cst_23 = arith.constant dense<0.000000e+00> : vector<8x128xf32>
    %39 = tpu.matmul %38, %10, %cst_23 {dimension_numbers = #tpu.dot_dimension_numbers<[1], [0], [0], [1], [0, 0, 1, 1], [], []>} : vector<8x32xbf16>, vector<32x128xbf16>, vector<8x128xf32> -> vector<8x128xf32>
    %40 = arith.addf %39, %17 : vector<8x128xf32>
    %41 = arith.addf %40, %14 : vector<8x128xf32>
    %42 = arith.negf %41 : vector<8x128xf32>
    %43 = math.exp %42 : vector<8x128xf32>
    %cst_24 = arith.constant 1.000000e+00 : f32
    %44 = vector.broadcast %cst_24 : f32 to vector<8x128xf32>
    %45 = arith.addf %44, %43 : vector<8x128xf32>
    %46 = arith.divf %44, %45 : vector<8x128xf32>
    %47 = math.tanh %41 : vector<8x128xf32>
    %48 = vector.extract_strided_slice %46 {offsets = [0, 0], sizes = [8, 32], strides = [1, 1]} : vector<8x128xf32> to vector<8x32xf32>
    %49 = vector.extract_strided_slice %46 {offsets = [0, 32], sizes = [8, 32], strides = [1, 1]} : vector<8x128xf32> to vector<8x32xf32>
    %50 = vector.extract_strided_slice %47 {offsets = [0, 64], sizes = [8, 32], strides = [1, 1]} : vector<8x128xf32> to vector<8x32xf32>
    %51 = vector.extract_strided_slice %46 {offsets = [0, 96], sizes = [8, 32], strides = [1, 1]} : vector<8x128xf32> to vector<8x32xf32>
    %52 = arith.mulf %49, %15 : vector<8x32xf32>
    %53 = arith.mulf %48, %50 : vector<8x32xf32>
    %54 = arith.addf %52, %53 : vector<8x32xf32>
    %55 = math.tanh %54 : vector<8x32xf32>
    %56 = arith.mulf %51, %55 : vector<8x32xf32>
    %57 = arith.truncf %56 : vector<8x32xf32> to vector<8x32xbf16>
    %cst_25 = arith.constant dense<0.000000e+00> : vector<8x128xf32>
    %58 = tpu.matmul %57, %11, %cst_25 {dimension_numbers = #tpu.dot_dimension_numbers<[1], [0], [0], [1], [0, 0, 1, 1], [], []>} : vector<8x32xbf16>, vector<32x128xbf16>, vector<8x128xf32> -> vector<8x128xf32>
    %c1 = arith.constant 1 : index
    %c0_26 = arith.constant 0 : index
    %c0_27 = arith.constant 0 : index
    %59 = vector.load %arg10[%c1, %c0_26, %c0_27] : memref<8x8x128xf32, #tpu.memory_space<vmem>>, vector<1x8x128xf32>
    %60 = vector.shape_cast %59 : vector<1x8x128xf32> to vector<8x128xf32>
    %61 = arith.truncf %37 : vector<8x32xf32> to vector<8x32xbf16>
    %cst_28 = arith.constant dense<0.000000e+00> : vector<8x128xf32>
    %62 = tpu.matmul %61, %9, %cst_28 {dimension_numbers = #tpu.dot_dimension_numbers<[1], [0], [0], [1], [0, 0, 1, 1], [], []>} : vector<8x32xbf16>, vector<32x128xbf16>, vector<8x128xf32> -> vector<8x128xf32>
    %63 = arith.addf %60, %62 : vector<8x128xf32>
    %64 = arith.negf %63 : vector<8x128xf32>
    %65 = math.exp %64 : vector<8x128xf32>
    %cst_29 = arith.constant 1.000000e+00 : f32
    %66 = vector.broadcast %cst_29 : f32 to vector<8x128xf32>
    %67 = arith.addf %66, %65 : vector<8x128xf32>
    %68 = arith.divf %66, %67 : vector<8x128xf32>
    %69 = math.tanh %63 : vector<8x128xf32>
    %70 = vector.extract_strided_slice %68 {offsets = [0, 0], sizes = [8, 32], strides = [1, 1]} : vector<8x128xf32> to vector<8x32xf32>
    %71 = vector.extract_strided_slice %68 {offsets = [0, 32], sizes = [8, 32], strides = [1, 1]} : vector<8x128xf32> to vector<8x32xf32>
    %72 = vector.extract_strided_slice %69 {offsets = [0, 64], sizes = [8, 32], strides = [1, 1]} : vector<8x128xf32> to vector<8x32xf32>
    %73 = vector.extract_strided_slice %68 {offsets = [0, 96], sizes = [8, 32], strides = [1, 1]} : vector<8x128xf32> to vector<8x32xf32>
    %74 = arith.mulf %71, %35 : vector<8x32xf32>
    %75 = arith.mulf %70, %72 : vector<8x32xf32>
    %76 = arith.addf %74, %75 : vector<8x32xf32>
    %77 = math.tanh %76 : vector<8x32xf32>
    %78 = arith.mulf %73, %77 : vector<8x32xf32>
    %79 = arith.truncf %78 : vector<8x32xf32> to vector<8x32xbf16>
    %cst_30 = arith.constant dense<0.000000e+00> : vector<8x128xf32>
    %80 = tpu.matmul %79, %10, %cst_30 {dimension_numbers = #tpu.dot_dimension_numbers<[1], [0], [0], [1], [0, 0, 1, 1], [], []>} : vector<8x32xbf16>, vector<32x128xbf16>, vector<8x128xf32> -> vector<8x128xf32>
    %81 = arith.addf %80, %58 : vector<8x128xf32>
    %82 = arith.addf %81, %14 : vector<8x128xf32>
    %83 = arith.negf %82 : vector<8x128xf32>
    %84 = math.exp %83 : vector<8x128xf32>
    %cst_31 = arith.constant 1.000000e+00 : f32
    %85 = vector.broadcast %cst_31 : f32 to vector<8x128xf32>
    %86 = arith.addf %85, %84 : vector<8x128xf32>
    %87 = arith.divf %85, %86 : vector<8x128xf32>
    %88 = math.tanh %82 : vector<8x128xf32>
    %89 = vector.extract_strided_slice %87 {offsets = [0, 0], sizes = [8, 32], strides = [1, 1]} : vector<8x128xf32> to vector<8x32xf32>
    %90 = vector.extract_strided_slice %87 {offsets = [0, 32], sizes = [8, 32], strides = [1, 1]} : vector<8x128xf32> to vector<8x32xf32>
    %91 = vector.extract_strided_slice %88 {offsets = [0, 64], sizes = [8, 32], strides = [1, 1]} : vector<8x128xf32> to vector<8x32xf32>
    %92 = vector.extract_strided_slice %87 {offsets = [0, 96], sizes = [8, 32], strides = [1, 1]} : vector<8x128xf32> to vector<8x32xf32>
    %93 = arith.mulf %90, %54 : vector<8x32xf32>
    %94 = arith.mulf %89, %91 : vector<8x32xf32>
    %95 = arith.addf %93, %94 : vector<8x32xf32>
    %96 = math.tanh %95 : vector<8x32xf32>
    %97 = arith.mulf %92, %96 : vector<8x32xf32>
    %98 = arith.truncf %97 : vector<8x32xf32> to vector<8x32xbf16>
    %cst_32 = arith.constant dense<0.000000e+00> : vector<8x128xf32>
    %99 = tpu.matmul %98, %11, %cst_32 {dimension_numbers = #tpu.dot_dimension_numbers<[1], [0], [0], [1], [0, 0, 1, 1], [], []>} : vector<8x32xbf16>, vector<32x128xbf16>, vector<8x128xf32> -> vector<8x128xf32>
    %c2 = arith.constant 2 : index
    %c0_33 = arith.constant 0 : index
    %c0_34 = arith.constant 0 : index
    %100 = vector.load %arg10[%c2, %c0_33, %c0_34] : memref<8x8x128xf32, #tpu.memory_space<vmem>>, vector<1x8x128xf32>
    %101 = vector.shape_cast %100 : vector<1x8x128xf32> to vector<8x128xf32>
    %102 = arith.truncf %78 : vector<8x32xf32> to vector<8x32xbf16>
    %cst_35 = arith.constant dense<0.000000e+00> : vector<8x128xf32>
    %103 = tpu.matmul %102, %9, %cst_35 {dimension_numbers = #tpu.dot_dimension_numbers<[1], [0], [0], [1], [0, 0, 1, 1], [], []>} : vector<8x32xbf16>, vector<32x128xbf16>, vector<8x128xf32> -> vector<8x128xf32>
    %104 = arith.addf %101, %103 : vector<8x128xf32>
    %105 = arith.negf %104 : vector<8x128xf32>
    %106 = math.exp %105 : vector<8x128xf32>
    %cst_36 = arith.constant 1.000000e+00 : f32
    %107 = vector.broadcast %cst_36 : f32 to vector<8x128xf32>
    %108 = arith.addf %107, %106 : vector<8x128xf32>
    %109 = arith.divf %107, %108 : vector<8x128xf32>
    %110 = math.tanh %104 : vector<8x128xf32>
    %111 = vector.extract_strided_slice %109 {offsets = [0, 0], sizes = [8, 32], strides = [1, 1]} : vector<8x128xf32> to vector<8x32xf32>
    %112 = vector.extract_strided_slice %109 {offsets = [0, 32], sizes = [8, 32], strides = [1, 1]} : vector<8x128xf32> to vector<8x32xf32>
    %113 = vector.extract_strided_slice %110 {offsets = [0, 64], sizes = [8, 32], strides = [1, 1]} : vector<8x128xf32> to vector<8x32xf32>
    %114 = vector.extract_strided_slice %109 {offsets = [0, 96], sizes = [8, 32], strides = [1, 1]} : vector<8x128xf32> to vector<8x32xf32>
    %115 = arith.mulf %112, %76 : vector<8x32xf32>
    %116 = arith.mulf %111, %113 : vector<8x32xf32>
    %117 = arith.addf %115, %116 : vector<8x32xf32>
    %118 = math.tanh %117 : vector<8x32xf32>
    %119 = arith.mulf %114, %118 : vector<8x32xf32>
    %120 = arith.truncf %119 : vector<8x32xf32> to vector<8x32xbf16>
    %cst_37 = arith.constant dense<0.000000e+00> : vector<8x128xf32>
    %121 = tpu.matmul %120, %10, %cst_37 {dimension_numbers = #tpu.dot_dimension_numbers<[1], [0], [0], [1], [0, 0, 1, 1], [], []>} : vector<8x32xbf16>, vector<32x128xbf16>, vector<8x128xf32> -> vector<8x128xf32>
    %122 = arith.addf %121, %99 : vector<8x128xf32>
    %123 = arith.addf %122, %14 : vector<8x128xf32>
    %124 = arith.negf %123 : vector<8x128xf32>
    %125 = math.exp %124 : vector<8x128xf32>
    %cst_38 = arith.constant 1.000000e+00 : f32
    %126 = vector.broadcast %cst_38 : f32 to vector<8x128xf32>
    %127 = arith.addf %126, %125 : vector<8x128xf32>
    %128 = arith.divf %126, %127 : vector<8x128xf32>
    %129 = math.tanh %123 : vector<8x128xf32>
    %130 = vector.extract_strided_slice %128 {offsets = [0, 0], sizes = [8, 32], strides = [1, 1]} : vector<8x128xf32> to vector<8x32xf32>
    %131 = vector.extract_strided_slice %128 {offsets = [0, 32], sizes = [8, 32], strides = [1, 1]} : vector<8x128xf32> to vector<8x32xf32>
    %132 = vector.extract_strided_slice %129 {offsets = [0, 64], sizes = [8, 32], strides = [1, 1]} : vector<8x128xf32> to vector<8x32xf32>
    %133 = vector.extract_strided_slice %128 {offsets = [0, 96], sizes = [8, 32], strides = [1, 1]} : vector<8x128xf32> to vector<8x32xf32>
    %134 = arith.mulf %131, %95 : vector<8x32xf32>
    %135 = arith.mulf %130, %132 : vector<8x32xf32>
    %136 = arith.addf %134, %135 : vector<8x32xf32>
    %137 = math.tanh %136 : vector<8x32xf32>
    %138 = arith.mulf %133, %137 : vector<8x32xf32>
    %139 = arith.truncf %138 : vector<8x32xf32> to vector<8x32xbf16>
    %cst_39 = arith.constant dense<0.000000e+00> : vector<8x128xf32>
    %140 = tpu.matmul %139, %11, %cst_39 {dimension_numbers = #tpu.dot_dimension_numbers<[1], [0], [0], [1], [0, 0, 1, 1], [], []>} : vector<8x32xbf16>, vector<32x128xbf16>, vector<8x128xf32> -> vector<8x128xf32>
    %c3 = arith.constant 3 : index
    %c0_40 = arith.constant 0 : index
    %c0_41 = arith.constant 0 : index
    %141 = vector.load %arg10[%c3, %c0_40, %c0_41] : memref<8x8x128xf32, #tpu.memory_space<vmem>>, vector<1x8x128xf32>
    %142 = vector.shape_cast %141 : vector<1x8x128xf32> to vector<8x128xf32>
    %143 = arith.truncf %119 : vector<8x32xf32> to vector<8x32xbf16>
    %cst_42 = arith.constant dense<0.000000e+00> : vector<8x128xf32>
    %144 = tpu.matmul %143, %9, %cst_42 {dimension_numbers = #tpu.dot_dimension_numbers<[1], [0], [0], [1], [0, 0, 1, 1], [], []>} : vector<8x32xbf16>, vector<32x128xbf16>, vector<8x128xf32> -> vector<8x128xf32>
    %145 = arith.addf %142, %144 : vector<8x128xf32>
    %146 = arith.negf %145 : vector<8x128xf32>
    %147 = math.exp %146 : vector<8x128xf32>
    %cst_43 = arith.constant 1.000000e+00 : f32
    %148 = vector.broadcast %cst_43 : f32 to vector<8x128xf32>
    %149 = arith.addf %148, %147 : vector<8x128xf32>
    %150 = arith.divf %148, %149 : vector<8x128xf32>
    %151 = math.tanh %145 : vector<8x128xf32>
    %152 = vector.extract_strided_slice %150 {offsets = [0, 0], sizes = [8, 32], strides = [1, 1]} : vector<8x128xf32> to vector<8x32xf32>
    %153 = vector.extract_strided_slice %150 {offsets = [0, 32], sizes = [8, 32], strides = [1, 1]} : vector<8x128xf32> to vector<8x32xf32>
    %154 = vector.extract_strided_slice %151 {offsets = [0, 64], sizes = [8, 32], strides = [1, 1]} : vector<8x128xf32> to vector<8x32xf32>
    %155 = vector.extract_strided_slice %150 {offsets = [0, 96], sizes = [8, 32], strides = [1, 1]} : vector<8x128xf32> to vector<8x32xf32>
    %156 = arith.mulf %153, %117 : vector<8x32xf32>
    %157 = arith.mulf %152, %154 : vector<8x32xf32>
    %158 = arith.addf %156, %157 : vector<8x32xf32>
    %159 = math.tanh %158 : vector<8x32xf32>
    %160 = arith.mulf %155, %159 : vector<8x32xf32>
    %161 = arith.truncf %160 : vector<8x32xf32> to vector<8x32xbf16>
    %cst_44 = arith.constant dense<0.000000e+00> : vector<8x128xf32>
    %162 = tpu.matmul %161, %10, %cst_44 {dimension_numbers = #tpu.dot_dimension_numbers<[1], [0], [0], [1], [0, 0, 1, 1], [], []>} : vector<8x32xbf16>, vector<32x128xbf16>, vector<8x128xf32> -> vector<8x128xf32>
    %163 = arith.addf %162, %140 : vector<8x128xf32>
    %164 = arith.addf %163, %14 : vector<8x128xf32>
    %165 = arith.negf %164 : vector<8x128xf32>
    %166 = math.exp %165 : vector<8x128xf32>
    %cst_45 = arith.constant 1.000000e+00 : f32
    %167 = vector.broadcast %cst_45 : f32 to vector<8x128xf32>
    %168 = arith.addf %167, %166 : vector<8x128xf32>
    %169 = arith.divf %167, %168 : vector<8x128xf32>
    %170 = math.tanh %164 : vector<8x128xf32>
    %171 = vector.extract_strided_slice %169 {offsets = [0, 0], sizes = [8, 32], strides = [1, 1]} : vector<8x128xf32> to vector<8x32xf32>
    %172 = vector.extract_strided_slice %169 {offsets = [0, 32], sizes = [8, 32], strides = [1, 1]} : vector<8x128xf32> to vector<8x32xf32>
    %173 = vector.extract_strided_slice %170 {offsets = [0, 64], sizes = [8, 32], strides = [1, 1]} : vector<8x128xf32> to vector<8x32xf32>
    %174 = vector.extract_strided_slice %169 {offsets = [0, 96], sizes = [8, 32], strides = [1, 1]} : vector<8x128xf32> to vector<8x32xf32>
    %175 = arith.mulf %172, %136 : vector<8x32xf32>
    %176 = arith.mulf %171, %173 : vector<8x32xf32>
    %177 = arith.addf %175, %176 : vector<8x32xf32>
    %178 = math.tanh %177 : vector<8x32xf32>
    %179 = arith.mulf %174, %178 : vector<8x32xf32>
    %180 = arith.truncf %179 : vector<8x32xf32> to vector<8x32xbf16>
    %cst_46 = arith.constant dense<0.000000e+00> : vector<8x128xf32>
    %181 = tpu.matmul %180, %11, %cst_46 {dimension_numbers = #tpu.dot_dimension_numbers<[1], [0], [0], [1], [0, 0, 1, 1], [], []>} : vector<8x32xbf16>, vector<32x128xbf16>, vector<8x128xf32> -> vector<8x128xf32>
    %c4 = arith.constant 4 : index
    %c0_47 = arith.constant 0 : index
    %c0_48 = arith.constant 0 : index
    %182 = vector.load %arg10[%c4, %c0_47, %c0_48] : memref<8x8x128xf32, #tpu.memory_space<vmem>>, vector<1x8x128xf32>
    %183 = vector.shape_cast %182 : vector<1x8x128xf32> to vector<8x128xf32>
    %184 = arith.truncf %160 : vector<8x32xf32> to vector<8x32xbf16>
    %cst_49 = arith.constant dense<0.000000e+00> : vector<8x128xf32>
    %185 = tpu.matmul %184, %9, %cst_49 {dimension_numbers = #tpu.dot_dimension_numbers<[1], [0], [0], [1], [0, 0, 1, 1], [], []>} : vector<8x32xbf16>, vector<32x128xbf16>, vector<8x128xf32> -> vector<8x128xf32>
    %186 = arith.addf %183, %185 : vector<8x128xf32>
    %187 = arith.negf %186 : vector<8x128xf32>
    %188 = math.exp %187 : vector<8x128xf32>
    %cst_50 = arith.constant 1.000000e+00 : f32
    %189 = vector.broadcast %cst_50 : f32 to vector<8x128xf32>
    %190 = arith.addf %189, %188 : vector<8x128xf32>
    %191 = arith.divf %189, %190 : vector<8x128xf32>
    %192 = math.tanh %186 : vector<8x128xf32>
    %193 = vector.extract_strided_slice %191 {offsets = [0, 0], sizes = [8, 32], strides = [1, 1]} : vector<8x128xf32> to vector<8x32xf32>
    %194 = vector.extract_strided_slice %191 {offsets = [0, 32], sizes = [8, 32], strides = [1, 1]} : vector<8x128xf32> to vector<8x32xf32>
    %195 = vector.extract_strided_slice %192 {offsets = [0, 64], sizes = [8, 32], strides = [1, 1]} : vector<8x128xf32> to vector<8x32xf32>
    %196 = vector.extract_strided_slice %191 {offsets = [0, 96], sizes = [8, 32], strides = [1, 1]} : vector<8x128xf32> to vector<8x32xf32>
    %197 = arith.mulf %194, %158 : vector<8x32xf32>
    %198 = arith.mulf %193, %195 : vector<8x32xf32>
    %199 = arith.addf %197, %198 : vector<8x32xf32>
    %200 = math.tanh %199 : vector<8x32xf32>
    %201 = arith.mulf %196, %200 : vector<8x32xf32>
    %202 = arith.truncf %201 : vector<8x32xf32> to vector<8x32xbf16>
    %cst_51 = arith.constant dense<0.000000e+00> : vector<8x128xf32>
    %203 = tpu.matmul %202, %10, %cst_51 {dimension_numbers = #tpu.dot_dimension_numbers<[1], [0], [0], [1], [0, 0, 1, 1], [], []>} : vector<8x32xbf16>, vector<32x128xbf16>, vector<8x128xf32> -> vector<8x128xf32>
    %204 = arith.addf %203, %181 : vector<8x128xf32>
    %205 = arith.addf %204, %14 : vector<8x128xf32>
    %206 = arith.negf %205 : vector<8x128xf32>
    %207 = math.exp %206 : vector<8x128xf32>
    %cst_52 = arith.constant 1.000000e+00 : f32
    %208 = vector.broadcast %cst_52 : f32 to vector<8x128xf32>
    %209 = arith.addf %208, %207 : vector<8x128xf32>
    %210 = arith.divf %208, %209 : vector<8x128xf32>
    %211 = math.tanh %205 : vector<8x128xf32>
    %212 = vector.extract_strided_slice %210 {offsets = [0, 0], sizes = [8, 32], strides = [1, 1]} : vector<8x128xf32> to vector<8x32xf32>
    %213 = vector.extract_strided_slice %210 {offsets = [0, 32], sizes = [8, 32], strides = [1, 1]} : vector<8x128xf32> to vector<8x32xf32>
    %214 = vector.extract_strided_slice %211 {offsets = [0, 64], sizes = [8, 32], strides = [1, 1]} : vector<8x128xf32> to vector<8x32xf32>
    %215 = vector.extract_strided_slice %210 {offsets = [0, 96], sizes = [8, 32], strides = [1, 1]} : vector<8x128xf32> to vector<8x32xf32>
    %216 = arith.mulf %213, %177 : vector<8x32xf32>
    %217 = arith.mulf %212, %214 : vector<8x32xf32>
    %218 = arith.addf %216, %217 : vector<8x32xf32>
    %219 = math.tanh %218 : vector<8x32xf32>
    %220 = arith.mulf %215, %219 : vector<8x32xf32>
    %221 = arith.truncf %220 : vector<8x32xf32> to vector<8x32xbf16>
    %cst_53 = arith.constant dense<0.000000e+00> : vector<8x128xf32>
    %222 = tpu.matmul %221, %11, %cst_53 {dimension_numbers = #tpu.dot_dimension_numbers<[1], [0], [0], [1], [0, 0, 1, 1], [], []>} : vector<8x32xbf16>, vector<32x128xbf16>, vector<8x128xf32> -> vector<8x128xf32>
    %c5 = arith.constant 5 : index
    %c0_54 = arith.constant 0 : index
    %c0_55 = arith.constant 0 : index
    %223 = vector.load %arg10[%c5, %c0_54, %c0_55] : memref<8x8x128xf32, #tpu.memory_space<vmem>>, vector<1x8x128xf32>
    %224 = vector.shape_cast %223 : vector<1x8x128xf32> to vector<8x128xf32>
    %225 = arith.truncf %201 : vector<8x32xf32> to vector<8x32xbf16>
    %cst_56 = arith.constant dense<0.000000e+00> : vector<8x128xf32>
    %226 = tpu.matmul %225, %9, %cst_56 {dimension_numbers = #tpu.dot_dimension_numbers<[1], [0], [0], [1], [0, 0, 1, 1], [], []>} : vector<8x32xbf16>, vector<32x128xbf16>, vector<8x128xf32> -> vector<8x128xf32>
    %227 = arith.addf %224, %226 : vector<8x128xf32>
    %228 = arith.negf %227 : vector<8x128xf32>
    %229 = math.exp %228 : vector<8x128xf32>
    %cst_57 = arith.constant 1.000000e+00 : f32
    %230 = vector.broadcast %cst_57 : f32 to vector<8x128xf32>
    %231 = arith.addf %230, %229 : vector<8x128xf32>
    %232 = arith.divf %230, %231 : vector<8x128xf32>
    %233 = math.tanh %227 : vector<8x128xf32>
    %234 = vector.extract_strided_slice %232 {offsets = [0, 0], sizes = [8, 32], strides = [1, 1]} : vector<8x128xf32> to vector<8x32xf32>
    %235 = vector.extract_strided_slice %232 {offsets = [0, 32], sizes = [8, 32], strides = [1, 1]} : vector<8x128xf32> to vector<8x32xf32>
    %236 = vector.extract_strided_slice %233 {offsets = [0, 64], sizes = [8, 32], strides = [1, 1]} : vector<8x128xf32> to vector<8x32xf32>
    %237 = vector.extract_strided_slice %232 {offsets = [0, 96], sizes = [8, 32], strides = [1, 1]} : vector<8x128xf32> to vector<8x32xf32>
    %238 = arith.mulf %235, %199 : vector<8x32xf32>
    %239 = arith.mulf %234, %236 : vector<8x32xf32>
    %240 = arith.addf %238, %239 : vector<8x32xf32>
    %241 = math.tanh %240 : vector<8x32xf32>
    %242 = arith.mulf %237, %241 : vector<8x32xf32>
    %243 = arith.truncf %242 : vector<8x32xf32> to vector<8x32xbf16>
    %cst_58 = arith.constant dense<0.000000e+00> : vector<8x128xf32>
    %244 = tpu.matmul %243, %10, %cst_58 {dimension_numbers = #tpu.dot_dimension_numbers<[1], [0], [0], [1], [0, 0, 1, 1], [], []>} : vector<8x32xbf16>, vector<32x128xbf16>, vector<8x128xf32> -> vector<8x128xf32>
    %245 = arith.addf %244, %222 : vector<8x128xf32>
    %246 = arith.addf %245, %14 : vector<8x128xf32>
    %247 = arith.negf %246 : vector<8x128xf32>
    %248 = math.exp %247 : vector<8x128xf32>
    %cst_59 = arith.constant 1.000000e+00 : f32
    %249 = vector.broadcast %cst_59 : f32 to vector<8x128xf32>
    %250 = arith.addf %249, %248 : vector<8x128xf32>
    %251 = arith.divf %249, %250 : vector<8x128xf32>
    %252 = math.tanh %246 : vector<8x128xf32>
    %253 = vector.extract_strided_slice %251 {offsets = [0, 0], sizes = [8, 32], strides = [1, 1]} : vector<8x128xf32> to vector<8x32xf32>
    %254 = vector.extract_strided_slice %251 {offsets = [0, 32], sizes = [8, 32], strides = [1, 1]} : vector<8x128xf32> to vector<8x32xf32>
    %255 = vector.extract_strided_slice %252 {offsets = [0, 64], sizes = [8, 32], strides = [1, 1]} : vector<8x128xf32> to vector<8x32xf32>
    %256 = vector.extract_strided_slice %251 {offsets = [0, 96], sizes = [8, 32], strides = [1, 1]} : vector<8x128xf32> to vector<8x32xf32>
    %257 = arith.mulf %254, %218 : vector<8x32xf32>
    %258 = arith.mulf %253, %255 : vector<8x32xf32>
    %259 = arith.addf %257, %258 : vector<8x32xf32>
    %260 = math.tanh %259 : vector<8x32xf32>
    %261 = arith.mulf %256, %260 : vector<8x32xf32>
    %262 = arith.truncf %261 : vector<8x32xf32> to vector<8x32xbf16>
    %cst_60 = arith.constant dense<0.000000e+00> : vector<8x128xf32>
    %263 = tpu.matmul %262, %11, %cst_60 {dimension_numbers = #tpu.dot_dimension_numbers<[1], [0], [0], [1], [0, 0, 1, 1], [], []>} : vector<8x32xbf16>, vector<32x128xbf16>, vector<8x128xf32> -> vector<8x128xf32>
    %c6 = arith.constant 6 : index
    %c0_61 = arith.constant 0 : index
    %c0_62 = arith.constant 0 : index
    %264 = vector.load %arg10[%c6, %c0_61, %c0_62] : memref<8x8x128xf32, #tpu.memory_space<vmem>>, vector<1x8x128xf32>
    %265 = vector.shape_cast %264 : vector<1x8x128xf32> to vector<8x128xf32>
    %266 = arith.truncf %242 : vector<8x32xf32> to vector<8x32xbf16>
    %cst_63 = arith.constant dense<0.000000e+00> : vector<8x128xf32>
    %267 = tpu.matmul %266, %9, %cst_63 {dimension_numbers = #tpu.dot_dimension_numbers<[1], [0], [0], [1], [0, 0, 1, 1], [], []>} : vector<8x32xbf16>, vector<32x128xbf16>, vector<8x128xf32> -> vector<8x128xf32>
    %268 = arith.addf %265, %267 : vector<8x128xf32>
    %269 = arith.negf %268 : vector<8x128xf32>
    %270 = math.exp %269 : vector<8x128xf32>
    %cst_64 = arith.constant 1.000000e+00 : f32
    %271 = vector.broadcast %cst_64 : f32 to vector<8x128xf32>
    %272 = arith.addf %271, %270 : vector<8x128xf32>
    %273 = arith.divf %271, %272 : vector<8x128xf32>
    %274 = math.tanh %268 : vector<8x128xf32>
    %275 = vector.extract_strided_slice %273 {offsets = [0, 0], sizes = [8, 32], strides = [1, 1]} : vector<8x128xf32> to vector<8x32xf32>
    %276 = vector.extract_strided_slice %273 {offsets = [0, 32], sizes = [8, 32], strides = [1, 1]} : vector<8x128xf32> to vector<8x32xf32>
    %277 = vector.extract_strided_slice %274 {offsets = [0, 64], sizes = [8, 32], strides = [1, 1]} : vector<8x128xf32> to vector<8x32xf32>
    %278 = vector.extract_strided_slice %273 {offsets = [0, 96], sizes = [8, 32], strides = [1, 1]} : vector<8x128xf32> to vector<8x32xf32>
    %279 = arith.mulf %276, %240 : vector<8x32xf32>
    %280 = arith.mulf %275, %277 : vector<8x32xf32>
    %281 = arith.addf %279, %280 : vector<8x32xf32>
    %282 = math.tanh %281 : vector<8x32xf32>
    %283 = arith.mulf %278, %282 : vector<8x32xf32>
    %284 = arith.truncf %283 : vector<8x32xf32> to vector<8x32xbf16>
    %cst_65 = arith.constant dense<0.000000e+00> : vector<8x128xf32>
    %285 = tpu.matmul %284, %10, %cst_65 {dimension_numbers = #tpu.dot_dimension_numbers<[1], [0], [0], [1], [0, 0, 1, 1], [], []>} : vector<8x32xbf16>, vector<32x128xbf16>, vector<8x128xf32> -> vector<8x128xf32>
    %286 = arith.addf %285, %263 : vector<8x128xf32>
    %287 = arith.addf %286, %14 : vector<8x128xf32>
    %288 = arith.negf %287 : vector<8x128xf32>
    %289 = math.exp %288 : vector<8x128xf32>
    %cst_66 = arith.constant 1.000000e+00 : f32
    %290 = vector.broadcast %cst_66 : f32 to vector<8x128xf32>
    %291 = arith.addf %290, %289 : vector<8x128xf32>
    %292 = arith.divf %290, %291 : vector<8x128xf32>
    %293 = math.tanh %287 : vector<8x128xf32>
    %294 = vector.extract_strided_slice %292 {offsets = [0, 0], sizes = [8, 32], strides = [1, 1]} : vector<8x128xf32> to vector<8x32xf32>
    %295 = vector.extract_strided_slice %292 {offsets = [0, 32], sizes = [8, 32], strides = [1, 1]} : vector<8x128xf32> to vector<8x32xf32>
    %296 = vector.extract_strided_slice %293 {offsets = [0, 64], sizes = [8, 32], strides = [1, 1]} : vector<8x128xf32> to vector<8x32xf32>
    %297 = vector.extract_strided_slice %292 {offsets = [0, 96], sizes = [8, 32], strides = [1, 1]} : vector<8x128xf32> to vector<8x32xf32>
    %298 = arith.mulf %295, %259 : vector<8x32xf32>
    %299 = arith.mulf %294, %296 : vector<8x32xf32>
    %300 = arith.addf %298, %299 : vector<8x32xf32>
    %301 = math.tanh %300 : vector<8x32xf32>
    %302 = arith.mulf %297, %301 : vector<8x32xf32>
    %303 = arith.truncf %302 : vector<8x32xf32> to vector<8x32xbf16>
    %cst_67 = arith.constant dense<0.000000e+00> : vector<8x128xf32>
    %304 = tpu.matmul %303, %11, %cst_67 {dimension_numbers = #tpu.dot_dimension_numbers<[1], [0], [0], [1], [0, 0, 1, 1], [], []>} : vector<8x32xbf16>, vector<32x128xbf16>, vector<8x128xf32> -> vector<8x128xf32>
    %c7 = arith.constant 7 : index
    %c0_68 = arith.constant 0 : index
    %c0_69 = arith.constant 0 : index
    %305 = vector.load %arg10[%c7, %c0_68, %c0_69] : memref<8x8x128xf32, #tpu.memory_space<vmem>>, vector<1x8x128xf32>
    %306 = vector.shape_cast %305 : vector<1x8x128xf32> to vector<8x128xf32>
    %307 = arith.truncf %283 : vector<8x32xf32> to vector<8x32xbf16>
    %cst_70 = arith.constant dense<0.000000e+00> : vector<8x128xf32>
    %308 = tpu.matmul %307, %9, %cst_70 {dimension_numbers = #tpu.dot_dimension_numbers<[1], [0], [0], [1], [0, 0, 1, 1], [], []>} : vector<8x32xbf16>, vector<32x128xbf16>, vector<8x128xf32> -> vector<8x128xf32>
    %309 = arith.addf %306, %308 : vector<8x128xf32>
    %310 = arith.negf %309 : vector<8x128xf32>
    %311 = math.exp %310 : vector<8x128xf32>
    %cst_71 = arith.constant 1.000000e+00 : f32
    %312 = vector.broadcast %cst_71 : f32 to vector<8x128xf32>
    %313 = arith.addf %312, %311 : vector<8x128xf32>
    %314 = arith.divf %312, %313 : vector<8x128xf32>
    %315 = math.tanh %309 : vector<8x128xf32>
    %316 = vector.extract_strided_slice %314 {offsets = [0, 0], sizes = [8, 32], strides = [1, 1]} : vector<8x128xf32> to vector<8x32xf32>
    %317 = vector.extract_strided_slice %314 {offsets = [0, 32], sizes = [8, 32], strides = [1, 1]} : vector<8x128xf32> to vector<8x32xf32>
    %318 = vector.extract_strided_slice %315 {offsets = [0, 64], sizes = [8, 32], strides = [1, 1]} : vector<8x128xf32> to vector<8x32xf32>
    %319 = vector.extract_strided_slice %314 {offsets = [0, 96], sizes = [8, 32], strides = [1, 1]} : vector<8x128xf32> to vector<8x32xf32>
    %320 = arith.mulf %317, %281 : vector<8x32xf32>
    %321 = arith.mulf %316, %318 : vector<8x32xf32>
    %322 = arith.addf %320, %321 : vector<8x32xf32>
    %323 = math.tanh %322 : vector<8x32xf32>
    %324 = arith.mulf %319, %323 : vector<8x32xf32>
    %325 = arith.truncf %324 : vector<8x32xf32> to vector<8x32xbf16>
    %cst_72 = arith.constant dense<0.000000e+00> : vector<8x128xf32>
    %326 = tpu.matmul %325, %10, %cst_72 {dimension_numbers = #tpu.dot_dimension_numbers<[1], [0], [0], [1], [0, 0, 1, 1], [], []>} : vector<8x32xbf16>, vector<32x128xbf16>, vector<8x128xf32> -> vector<8x128xf32>
    %327 = arith.addf %326, %304 : vector<8x128xf32>
    %328 = arith.addf %327, %14 : vector<8x128xf32>
    %329 = arith.negf %328 : vector<8x128xf32>
    %330 = math.exp %329 : vector<8x128xf32>
    %cst_73 = arith.constant 1.000000e+00 : f32
    %331 = vector.broadcast %cst_73 : f32 to vector<8x128xf32>
    %332 = arith.addf %331, %330 : vector<8x128xf32>
    %333 = arith.divf %331, %332 : vector<8x128xf32>
    %334 = math.tanh %328 : vector<8x128xf32>
    %335 = vector.extract_strided_slice %333 {offsets = [0, 0], sizes = [8, 32], strides = [1, 1]} : vector<8x128xf32> to vector<8x32xf32>
    %336 = vector.extract_strided_slice %333 {offsets = [0, 32], sizes = [8, 32], strides = [1, 1]} : vector<8x128xf32> to vector<8x32xf32>
    %337 = vector.extract_strided_slice %334 {offsets = [0, 64], sizes = [8, 32], strides = [1, 1]} : vector<8x128xf32> to vector<8x32xf32>
    %338 = vector.extract_strided_slice %333 {offsets = [0, 96], sizes = [8, 32], strides = [1, 1]} : vector<8x128xf32> to vector<8x32xf32>
    %339 = arith.mulf %336, %300 : vector<8x32xf32>
    %340 = arith.mulf %335, %337 : vector<8x32xf32>
    %341 = arith.addf %339, %340 : vector<8x32xf32>
    %342 = math.tanh %341 : vector<8x32xf32>
    %343 = arith.mulf %338, %342 : vector<8x32xf32>
    %344 = tpu.concatenate %56, %97, %138, %179, %220, %261, %302, %343 in 1 : vector<8x32xf32>, vector<8x32xf32>, vector<8x32xf32>, vector<8x32xf32>, vector<8x32xf32>, vector<8x32xf32>, vector<8x32xf32>, vector<8x32xf32> -> vector<8x256xf32>
    %c0_74 = arith.constant 0 : index
    %c0_75 = arith.constant 0 : index
    %345 = vector.load %arg7[%c0_74, %c0_75] : memref<256x128xf32, #tpu.memory_space<vmem>>, vector<256x128xf32>
    %cst_76 = arith.constant dense<0.000000e+00> : vector<8x128xf32>
    %346 = tpu.matmul %344, %345, %cst_76 {dimension_numbers = #tpu.dot_dimension_numbers<[1], [0], [0], [1], [0, 0, 1, 1], [], []>} : vector<8x256xf32>, vector<256x128xf32>, vector<8x128xf32> -> vector<8x128xf32>
    %c0_77 = arith.constant 0 : index
    %c0_78 = arith.constant 0 : index
    %347 = vector.load %arg8[%c0_77, %c0_78] : memref<1x128xf32, #tpu.memory_space<vmem>>, vector<1x128xf32>
    %348 = vector.broadcast %347 : vector<1x128xf32> to vector<8x128xf32>
    %349 = arith.addf %346, %348 : vector<8x128xf32>
    %c0_79 = arith.constant 0 : index
    %c0_80 = arith.constant 0 : index
    %350 = vector.load %arg9[%c0_79, %c0_80] : memref<8x128xf32, #tpu.memory_space<vmem>>, vector<8x128xf32>
    tpu.vector_store %arg9[%c0_79, %c0_80], %349 {strides = array<i32>} : memref<8x128xf32, #tpu.memory_space<vmem>>, vector<8x128xf32>,
    return
  }
}

</mosaic_0001>

<llo_original>
// kernel: tpu_custom_call.1
$region0: #{tpu_custom_call.1}
  #allocation0 [shape = 'u32[]', space=smem, size = 0x4, offset = 0x4, fixed_abs, tag = 'smem constant byte address 0x4 - core index']
  #allocation1 [shape = 'u32[144,128]{1,0:T(1,128)}', space=vmem, size = 0x12000, scoped, tag = 'internal scratch']
  #allocation2 [shape = 'f32[8,8,128]{2,1,0:T(8,128)}', space=vmem, size = 0x8000, scoped, tag = 'scratch operand']
  %s0 = inlined_call_operand.vmem [shape: f32[64,32], index: 0, kind: input, shape index: {}]
  %s1 = inlined_call_operand.vmem [shape: f32[32,128], index: 1, kind: input, shape index: {}]
  %s2 = inlined_call_operand.vmem [shape: bf16[32,128], index: 2, kind: input, shape index: {}]
  %s3 = inlined_call_operand.vmem [shape: f32[1,128], index: 3, kind: input, shape index: {}]
  %s4 = inlined_call_operand.vmem [shape: bf16[32,128], index: 4, kind: input, shape index: {}]
  %s5 = inlined_call_operand.vmem [shape: bf16[32,128], index: 5, kind: input, shape index: {}]
  %s6 = inlined_call_operand.vmem [shape: f32[1,128], index: 6, kind: input, shape index: {}]
  %s7 = inlined_call_operand.hbm [shape: f32[256,128], index: 7, kind: input, shape index: {}]
  %s8 = inlined_call_operand.vmem [shape: f32[1,128], index: 8, kind: input, shape index: {}]
  %s9 = inlined_call_operand.hbm [shape: f32[8,128], index: 9, kind: output, shape index: {}]
  %s10 = sld [smem:[#allocation0]]
  $region50: #{tpu_custom_call.1} parent=0
    _
  %s12 = ssub.s32 1, %s10
  %s13 = scalar_select 0, %s12, %s10
  $region1: #{tpu_custom_call.1} parent=0
    #allocation3 [shape = 'u8[131072]{0}', space=vmem, size = 0x20000, scoped, tag = 'input window, operand 7, single buffered']
    #allocation4 [shape = 's32[1]{0}', space=sflag, size = 0x4, scoped, tag = 'scoped memory for tpu_custom_call.1']
    #allocation5 [shape = 's32[1]{0}', space=sflag, size = 0x4, scoped, tag = 'scoped memory for tpu_custom_call.1']
    #allocation6 [shape = 'u8[4096]{0}', space=vmem, size = 0x1000, scoped, tag = 'output window, operand 0, single buffered']
    %14 = vsyncpa [#allocation4], 0
    %15 = vsyncpa [#allocation5], 0
    // Predicated region
    $region2: #{tpu_custom_call.1} parent=1 // pred_check
      _
    $region3: #{tpu_custom_call.1} parent=1 // pred_check_branch
      %17 = sbr.rel (0) target = $region5
    $region4: #{tpu_custom_call.1} parent=1 // pred_region
      _
    $region5: #{tpu_custom_call.1} parent=1 // pred_fallthru
      _
    // Predicated region
    $region6: #{tpu_custom_call.1} parent=1 // pred_check
      _
    $region7: #{tpu_custom_call.1} parent=1 // pred_check_branch
      %19 = sbr.rel (0) target = $region9
    $region8: #{tpu_custom_call.1} parent=1 // pred_region
      _
    $region9: #{tpu_custom_call.1} parent=1 // pred_fallthru
      _
    // Predicated region
    $region10: #{tpu_custom_call.1} parent=1 // pred_check
      _
    $region11: #{tpu_custom_call.1} parent=1 // pred_check_branch
      %21 = sbr.rel (0) target = $region13
    $region12: #{tpu_custom_call.1} parent=1 // pred_region
      _
    $region13: #{tpu_custom_call.1} parent=1 // pred_fallthru
      _
    // Predicated region
    $region14: #{tpu_custom_call.1} parent=1 // pred_check
      _
    $region15: #{tpu_custom_call.1} parent=1 // pred_check_branch
      %23 = sbr.rel (0) target = $region17
    $region16: #{tpu_custom_call.1} parent=1 // pred_region
      _
    $region17: #{tpu_custom_call.1} parent=1 // pred_fallthru
      _
    // Predicated region
    $region18: #{tpu_custom_call.1} parent=1 // pred_check
      _
    $region19: #{tpu_custom_call.1} parent=1 // pred_check_branch
      %25 = sbr.rel (0) target = $region21
    $region20: #{tpu_custom_call.1} parent=1 // pred_region
      _
    $region21: #{tpu_custom_call.1} parent=1 // pred_fallthru
      _
    // Predicated region
    $region22: #{tpu_custom_call.1} parent=1 // pred_check
      _
    $region23: #{tpu_custom_call.1} parent=1 // pred_check_branch
      %27 = sbr.rel (0) target = $region25
    $region24: #{tpu_custom_call.1} parent=1 // pred_region
      _
    $region25: #{tpu_custom_call.1} parent=1 // pred_fallthru
      _
    // Predicated region
    $region26: #{tpu_custom_call.1} parent=1 // pred_check
      _
    $region27: #{tpu_custom_call.1} parent=1 // pred_check_branch
      %29 = sbr.rel (0) target = $region29
    $region28: #{tpu_custom_call.1} parent=1 // pred_region
      _
    $region29: #{tpu_custom_call.1} parent=1 // pred_fallthru
      _
    // Predicated region
    $region30: #{tpu_custom_call.1} parent=1 // pred_check
      _
    $region31: #{tpu_custom_call.1} parent=1 // pred_check_branch
      %31 = sbr.rel (0) target = $region33
    $region32: #{tpu_custom_call.1} parent=1 // pred_region
      %s33 = ssub.s32 4096, 4096
      %34 = vsyncadd [#allocation4], %s33
      %s35 = sshll.u32 [#allocation3], 4
      %s36 = int_to_ptr.vmem [resolvable:$true] %s35
      %41 = dma.hbm_to_vmem [thread:$0]  %s7, 4096, %s36, [#allocation4], 128, 128, 8
    $region33: #{tpu_custom_call.1} parent=1 // pred_fallthru
      _
    // Predicated region
    $region34: #{tpu_custom_call.1} parent=1 // pred_check
      _
    $region35: #{tpu_custom_call.1} parent=1 // pred_check_branch
      %43 = sbr.rel (0) target = $region37
    $region36: #{tpu_custom_call.1} parent=1 // pred_region
      _
    $region37: #{tpu_custom_call.1} parent=1 // pred_fallthru
      _
    // Predicated region
    $region38: #{tpu_custom_call.1} parent=1 // pred_check
      _
    $region39: #{tpu_custom_call.1} parent=1 // pred_check_branch
      %45 = sbr.rel (0) target = $region41
    $region40: #{tpu_custom_call.1} parent=1 // pred_region
      %46 = dma.done [#allocation4], 4096
    $region41: #{tpu_custom_call.1} parent=1 // pred_fallthru
      _
    %v48 = vld [vmem:[%s0] sm:$0xff]
    %v49 = vld [vmem:[%s0 + $0x8] sm:$0xff]
    %v50 = vld [vmem:[%s0 + $0x10] sm:$0xff]
    %v51 = vld [vmem:[%s0 + $0x18] sm:$0xff]
    %v52 = vld [vmem:[%s0 + $0x20] sm:$0xff]
    %v53 = vld [vmem:[%s0 + $0x28] sm:$0xff]
    %v54 = vld [vmem:[%s0 + $0x30] sm:$0xff]
    %v55 = vld [vmem:[%s0 + $0x38] sm:$0xff]
    %v56 = vld [vmem:[%s1] sm:$0xff]
    %v57 = vld [vmem:[%s1 + $0x8] sm:$0xff]
    %v58 = vld [vmem:[%s1 + $0x10] sm:$0xff]
    %v59 = vld [vmem:[%s1 + $0x18] sm:$0xff]
    %vm60 = vcmask 261120
    %v62 = vsel %vm60, %v48, 0
    %v65 = vsel %vm60, %v49, 0
    %v68 = vsel %vm60, %v50, 0
    %v71 = vsel %vm60, %v51, 0
    %v74 = vsel %vm60, %v52, 0
    %v77 = vsel %vm60, %v53, 0
    %v80 = vsel %vm60, %v54, 0
    %v83 = vsel %vm60, %v55, 0
    %85 = vmatprep.subr.mxu0 0.0
    %86 = vmatpush1.msra.mxu0 %v56
    %87 = vmatprep.subr.mxu0 0.0
    %88 = vmatpush1.msra.mxu0 %v57
    %89 = vmatprep.subr.mxu0 0.0
    %90 = vmatpush1.msra.mxu0 %v58
    %91 = vmatprep.subr.mxu0 0.0
    %92 = vmatpush1.msra.mxu0 %v59
    %93 = vmatprep.subr.mxu0 0.0
    %94 = vmatpush1.msra.mxu0 0.0
    %95 = vmatprep.subr.mxu0 0.0
    %96 = vmatpush1.msra.mxu0 0.0
    %97 = vmatprep.subr.mxu0 0.0
    %98 = vmatpush1.msra.mxu0 0.0
    %99 = vmatprep.subr.mxu0 0.0
    %100 = vmatpush1.msra.mxu0 0.0
    %101 = vmatprep.subr.mxu0 0.0
    %102 = vmatpush1.msra.mxu0 0.0
    %103 = vmatprep.subr.mxu0 0.0
    %104 = vmatpush1.msra.mxu0 0.0
    %105 = vmatprep.subr.mxu0 0.0
    %106 = vmatpush1.msra.mxu0 0.0
    %107 = vmatprep.subr.mxu0 0.0
    %108 = vmatpush1.msra.mxu0 0.0
    %109 = vmatprep.subr.mxu0 0.0
    %110 = vmatpush1.msra.mxu0 0.0
    %111 = vmatprep.subr.mxu0 0.0
    %112 = vmatpush1.msra.mxu0 0.0
    %113 = vmatprep.subr.mxu0 0.0
    %114 = vmatpush1.msra.mxu0 0.0
    %115 = vmatprep.subr.mxu0 0.0
    %116 = vmatpush1.msra.mxu0 0.0
    %117 = vmatprep.subr.mxu0 0.0
    %118 = vmatpush1.msra.mxu0 0.0
    %119 = vmatprep.subr.mxu0 0.0
    %120 = vmatpush1.msra.mxu0 0.0
    %121 = vmatprep.subr.mxu0 0.0
    %122 = vmatpush1.msra.mxu0 0.0
    %123 = vmatprep.subr.mxu0 0.0
    %124 = vmatpush1.msra.mxu0 0.0
    %125 = vmatprep.subr.mxu0 0.0
    %126 = vmatpush1.msra.mxu0 0.0
    %127 = vmatprep.subr.mxu0 0.0
    %128 = vmatpush1.msra.mxu0 0.0
    %129 = vmatprep.subr.mxu0 0.0
    %130 = vmatpush1.msra.mxu0 0.0
    %131 = vmatprep.subr.mxu0 0.0
    %132 = vmatpush1.msra.mxu0 0.0
    %133 = vmatprep.subr.mxu0 0.0
    %134 = vmatpush1.msra.mxu0 0.0
    %135 = vmatprep.subr.mxu0 0.0
    %136 = vmatpush1.msra.mxu0 0.0
    %137 = vmatprep.subr.mxu0 0.0
    %138 = vmatpush1.msra.mxu0 0.0
    %139 = vmatprep.subr.mxu0 0.0
    %140 = vmatpush1.msra.mxu0 0.0
    %141 = vmatprep.subr.mxu0 0.0
    %142 = vmatpush1.msra.mxu0 0.0
    %143 = vmatprep.subr.mxu0 0.0
    %144 = vmatpush1.msra.mxu0 0.0
    %145 = vmatprep.subr.mxu0 0.0
    %146 = vmatpush1.msra.mxu0 0.0
    %147 = vmatprep.subr.mxu0 0.0
    %148 = vmatpush1.msra.mxu0 0.0
    %149 = vmatprep.mubr.f32.mxu0 0.0
    %150 = vmatmul.mubr.f32.gmra.mrb[0].mxu0 %v62
    %v151 = vpop.f32.mrb[0].mxu0
    %v152 = vadd.f32 0.0, %v151
    %v153 = vpop.f32.mrb[0].mxu0
    %154 = vmatprep.mubr.f32.mxu0 0.0
    %155 = vmatmul.mubr.f32.gmra.mrb[0].mxu0 %v65
    %v156 = vpop.f32.mrb[0].mxu0
    %v157 = vadd.f32 0.0, %v156
    %v158 = vpop.f32.mrb[0].mxu0
    %159 = vmatprep.mubr.f32.mxu0 0.0
    %160 = vmatmul.mubr.f32.gmra.mrb[0].mxu0 %v68
    %v161 = vpop.f32.mrb[0].mxu0
    %v162 = vadd.f32 0.0, %v161
    %v163 = vpop.f32.mrb[0].mxu0
    %164 = vmatprep.mubr.f32.mxu0 0.0
    %165 = vmatmul.mubr.f32.gmra.mrb[0].mxu0 %v71
    %v166 = vpop.f32.mrb[0].mxu0
    %v167 = vadd.f32 0.0, %v166
    %v168 = vpop.f32.mrb[0].mxu0
    %169 = vmatprep.mubr.f32.mxu0 0.0
    %170 = vmatmul.mubr.f32.gmra.mrb[0].mxu0 %v74
    %v171 = vpop.f32.mrb[0].mxu0
    %v172 = vadd.f32 0.0, %v171
    %v173 = vpop.f32.mrb[0].mxu0
    %174 = vmatprep.mubr.f32.mxu0 0.0
    %175 = vmatmul.mubr.f32.gmra.mrb[0].mxu0 %v77
    %v176 = vpop.f32.mrb[0].mxu0
    %v177 = vadd.f32 0.0, %v176
    %v178 = vpop.f32.mrb[0].mxu0
    %179 = vmatprep.mubr.f32.mxu0 0.0
    %180 = vmatmul.mubr.f32.gmra.mrb[0].mxu0 %v80
    %v181 = vpop.f32.mrb[0].mxu0
    %v182 = vadd.f32 0.0, %v181
    %v183 = vpop.f32.mrb[0].mxu0
    %184 = vmatprep.mubr.f32.mxu0 0.0
    %185 = vmatmul.mubr.f32.gmra.mrb[0].mxu0 %v83
    %v186 = vpop.f32.mrb[0].mxu0
    %v187 = vadd.f32 0.0, %v186
    %v188 = vpop.f32.mrb[0].mxu0
    %189 = vdwg.mxu0
    %v190 = vld [vmem:[%s3] sm:$0x1]
    %v192 = vlaneseq
    %v193 = vshrl.u32 %v192, 7
    %v194 = vsub.s32 0, %v193
    %v195 = vrot.slane %v190, %v194
    %v197 = vadd.f32 %v152, %v195
    %v198 = vadd.f32 %v157, %v195
    %v199 = vadd.f32 %v162, %v195
    %v200 = vadd.f32 %v167, %v195
    %v201 = vadd.f32 %v172, %v195
    %v202 = vadd.f32 %v177, %v195
    %v203 = vadd.f32 %v182, %v195
    %v204 = vadd.f32 %v187, %v195
    %205 = vst [vmem:[#allocation2] sm:$0xff] %v197
    %206 = vst [vmem:[#allocation2 + $0x8] sm:$0xff] %v198
    %207 = vst [vmem:[#allocation2 + $0x10] sm:$0xff] %v199
    %208 = vst [vmem:[#allocation2 + $0x18] sm:$0xff] %v200
    %209 = vst [vmem:[#allocation2 + $0x20] sm:$0xff] %v201
    %210 = vst [vmem:[#allocation2 + $0x28] sm:$0xff] %v202
    %211 = vst [vmem:[#allocation2 + $0x30] sm:$0xff] %v203
    %212 = vst [vmem:[#allocation2 + $0x38] sm:$0xff] %v204
    %v213 = vld [vmem:[%s2] sm:$0xf]
    %v214 = vld [vmem:[%s2 + $0x4] sm:$0xf]
    %v215 = vld [vmem:[%s2 + $0x8] sm:$0xf]
    %v216 = vld [vmem:[%s2 + $0xc] sm:$0xf]
    %v217 = vld [vmem:[%s4] sm:$0xf]
    %v218 = vld [vmem:[%s4 + $0x4] sm:$0xf]
    %v219 = vld [vmem:[%s4 + $0x8] sm:$0xf]
    %v220 = vld [vmem:[%s4 + $0xc] sm:$0xf]
    %v221 = vld [vmem:[%s5] sm:$0xf]
    %v222 = vld [vmem:[%s5 + $0x4] sm:$0xf]
    %v223 = vld [vmem:[%s5 + $0x8] sm:$0xf]
    %v224 = vld [vmem:[%s5 + $0xc] sm:$0xf]
    %v225 = vld [vmem:[%s6] sm:$0x1]
    %v227 = vlaneseq
    %v228 = vshrl.u32 %v227, 7
    %v229 = vsub.s32 0, %v228
    %v230 = vrot.slane %v225, %v229
    %v236 = vunpack.c.l.b16 %v221
    %v237 = vunpack.c.l.b16 %v222
    %v238 = vunpack.c.l.b16 %v223
    %v239 = vunpack.c.l.b16 %v224
    %v240 = vpack.c.b16 %v237, %v236
    %v241 = vpack.c.b16 %v239, %v238
    %v245 = vsel %vm60, 0, 0
    %247 = vmatprep.subr.bf16.mxu0 0
    %248 = vmatpush1.bf16.msra.mxu0 %v240
    %249 = vmatprep.subr.bf16.mxu0 0
    %250 = vmatpush1.bf16.msra.mxu0 %v241
    %251 = vmatprep.subr.bf16.mxu0 0
    %252 = vmatpush1.bf16.msra.mxu0 0
    %253 = vmatprep.subr.bf16.mxu0 0
    %254 = vmatpush1.bf16.msra.mxu0 0
    %255 = vmatprep.subr.bf16.mxu0 0
    %256 = vmatpush1.bf16.msra.mxu0 0
    %257 = vmatprep.subr.bf16.mxu0 0
    %258 = vmatpush1.bf16.msra.mxu0 0
    %259 = vmatprep.subr.bf16.mxu0 0
    %260 = vmatpush1.bf16.msra.mxu0 0
    %261 = vmatprep.subr.bf16.mxu0 0
    %262 = vmatpush1.bf16.msra.mxu0 0
    %263 = vmatprep.subr.bf16.mxu0 0
    %264 = vmatpush1.bf16.msra.mxu0 0
    %265 = vmatprep.subr.bf16.mxu0 0
    %266 = vmatpush1.bf16.msra.mxu0 0
    %267 = vmatprep.subr.bf16.mxu0 0
    %268 = vmatpush1.bf16.msra.mxu0 0
    %269 = vmatprep.subr.bf16.mxu0 0
    %270 = vmatpush1.bf16.msra.mxu0 0
    %271 = vmatprep.subr.bf16.mxu0 0
    %272 = vmatpush1.bf16.msra.mxu0 0
    %273 = vmatprep.subr.bf16.mxu0 0
    %274 = vmatpush1.bf16.msra.mxu0 0
    %275 = vmatprep.subr.bf16.mxu0 0
    %276 = vmatpush1.bf16.msra.mxu0 0
    %277 = vmatprep.subr.bf16.mxu0 0
    %278 = vmatpush1.bf16.msra.mxu0 0
    %279 = vmatprep.mubr.bf16.mxu0 0
    %280 = vmatmul.mubr.bf16.gmra.mrb[0].mxu0 %v245
    %v281 = vpop.f32.mrb[0].mxu0
    %v282 = vadd.f32 0.0, %v281
    %v283 = vpop.f32.mrb[0].mxu0
    %v284 = vpop.f32.mrb[0].mxu0
    %v285 = vpop.f32.mrb[0].mxu0
    %286 = vdwg.mxu0
    %v287 = vld [vmem:[#allocation2] sm:$0xff]
    %v292 = vunpack.c.l.b16 %v213
    %v293 = vunpack.c.l.b16 %v214
    %v294 = vunpack.c.l.b16 %v215
    %v295 = vunpack.c.l.b16 %v216
    %v296 = vpack.c.b16 %v293, %v292
    %v297 = vpack.c.b16 %v295, %v294
    %300 = vmatprep.subr.bf16.mxu0 0
    %301 = vmatpush1.bf16.msra.mxu0 %v296
    %302 = vmatprep.subr.bf16.mxu0 0
    %303 = vmatpush1.bf16.msra.mxu0 %v297
    %304 = vmatprep.subr.bf16.mxu0 0
    %305 = vmatpush1.bf16.msra.mxu0 0
    %306 = vmatprep.subr.bf16.mxu0 0
    %307 = vmatpush1.bf16.msra.mxu0 0
    %308 = vmatprep.subr.bf16.mxu0 0
    %309 = vmatpush1.bf16.msra.mxu0 0
    %310 = vmatprep.subr.bf16.mxu0 0
    %311 = vmatpush1.bf16.msra.mxu0 0
    %312 = vmatprep.subr.bf16.mxu0 0
    %313 = vmatpush1.bf16.msra.mxu0 0
    %314 = vmatprep.subr.bf16.mxu0 0
    %315 = vmatpush1.bf16.msra.mxu0 0
    %316 = vmatprep.subr.bf16.mxu0 0
    %317 = vmatpush1.bf16.msra.mxu0 0
    %318 = vmatprep.subr.bf16.mxu0 0
    %319 = vmatpush1.bf16.msra.mxu0 0
    %320 = vmatprep.subr.bf16.mxu0 0
    %321 = vmatpush1.bf16.msra.mxu0 0
    %322 = vmatprep.subr.bf16.mxu0 0
    %323 = vmatpush1.bf16.msra.mxu0 0
    %324 = vmatprep.subr.bf16.mxu0 0
    %325 = vmatpush1.bf16.msra.mxu0 0
    %326 = vmatprep.subr.bf16.mxu0 0
    %327 = vmatpush1.bf16.msra.mxu0 0
    %328 = vmatprep.subr.bf16.mxu0 0
    %329 = vmatpush1.bf16.msra.mxu0 0
    %330 = vmatprep.subr.bf16.mxu0 0
    %331 = vmatpush1.bf16.msra.mxu0 0
    %332 = vmatprep.mubr.bf16.mxu0 0
    %333 = vmatmul.mubr.bf16.gmra.mrb[0].mxu0 %v245
    %v334 = vpop.f32.mrb[0].mxu0
    %v335 = vadd.f32 0.0, %v334
    %v336 = vpop.f32.mrb[0].mxu0
    %v337 = vpop.f32.mrb[0].mxu0
    %v338 = vpop.f32.mrb[0].mxu0
    %339 = vdwg.mxu0
    %v340 = vadd.f32 %v287, %v335
    %v341 = vxor.u32 %v340, 2147483648
    %v342 = vmul.f32 %v341, 1.442695
    %v343 = vpow.pop %v342
    %v344 = vadd.f32 %v343, 1.0
    %v345 = vrcp.pop %v344
    %v346 = vmul.f32 1.0, %v345
    %v347 = vtanh.pop %v340
    %v348 = vmul.f32 %v346, 0.0
    %350 = vrot.lane.b32.xlu0 %v347, 64
    %v351 = vpop.permute.xlu0 %350
    %v353 = vmul.f32 %v346, %v351
    %355 = vrot.lane.b32.xlu0 %v353, 32
    %v356 = vpop.permute.xlu0 %355
    %v358 = vadd.f32 %v348, %v356
    %v359 = vtanh.pop %v358
    %361 = vrot.lane.b32.xlu0 %v359, 64
    %v362 = vpop.permute.xlu0 %361
    %v364 = vmul.f32 %v346, %v362
    %v365 = vpack.c.bf16 %v364, %v364
    %367 = vrot.lane.b32.xlu0 %v365, 32
    %v368 = vpop.permute.xlu0 %367
    %v373 = vunpack.c.l.b16 %v217
    %v374 = vunpack.c.l.b16 %v218
    %v375 = vunpack.c.l.b16 %v219
    %v376 = vunpack.c.l.b16 %v220
    %v377 = vpack.c.b16 %v374, %v373
    %v378 = vpack.c.b16 %v376, %v375
    %v382 = vsel %vm60, %v368, 0
    %384 = vmatprep.subr.bf16.mxu0 0
    %385 = vmatpush1.bf16.msra.mxu0 %v377
    %386 = vmatprep.subr.bf16.mxu0 0
    %387 = vmatpush1.bf16.msra.mxu0 %v378
    %388 = vmatprep.subr.bf16.mxu0 0
    %389 = vmatpush1.bf16.msra.mxu0 0
    %390 = vmatprep.subr.bf16.mxu0 0
    %391 = vmatpush1.bf16.msra.mxu0 0
    %392 = vmatprep.subr.bf16.mxu0 0
    %393 = vmatpush1.bf16.msra.mxu0 0
    %394 = vmatprep.subr.bf16.mxu0 0
    %395 = vmatpush1.bf16.msra.mxu0 0
    %396 = vmatprep.subr.bf16.mxu0 0
    %397 = vmatpush1.bf16.msra.mxu0 0
    %398 = vmatprep.subr.bf16.mxu0 0
    %399 = vmatpush1.bf16.msra.mxu0 0
    %400 = vmatprep.subr.bf16.mxu0 0
    %401 = vmatpush1.bf16.msra.mxu0 0
    %402 = vmatprep.subr.bf16.mxu0 0
    %403 = vmatpush1.bf16.msra.mxu0 0
    %404 = vmatprep.subr.bf16.mxu0 0
    %405 = vmatpush1.bf16.msra.mxu0 0
    %406 = vmatprep.subr.bf16.mxu0 0
    %407 = vmatpush1.bf16.msra.mxu0 0
    %408 = vmatprep.subr.bf16.mxu0 0
    %409 = vmatpush1.bf16.msra.mxu0 0
    %410 = vmatprep.subr.bf16.mxu0 0
    %411 = vmatpush1.bf16.msra.mxu0 0
    %412 = vmatprep.subr.bf16.mxu0 0
    %413 = vmatpush1.bf16.msra.mxu0 0
    %414 = vmatprep.subr.bf16.mxu0 0
    %415 = vmatpush1.bf16.msra.mxu0 0
    %416 = vmatprep.mubr.bf16.mxu0 0
    %417 = vmatmul.mubr.bf16.gmra.mrb[0].mxu0 %v382
    %v418 = vpop.f32.mrb[0].mxu0
    %v419 = vadd.f32 %v282, %v418
    %v420 = vpop.f32.mrb[0].mxu0
    %v421 = vpop.f32.mrb[0].mxu0
    %v422 = vpop.f32.mrb[0].mxu0
    %423 = vdwg.mxu0
    %v424 = vadd.f32 %v419, %v230
    %v425 = vxor.u32 %v424, 2147483648
    %v426 = vmul.f32 %v425, 1.442695
    %v427 = vpow.pop %v426
    %v428 = vadd.f32 %v427, 1.0
    %v429 = vrcp.pop %v428
    %v430 = vmul.f32 1.0, %v429
    %v431 = vtanh.pop %v424
    %v432 = vmul.f32 %v430, 0.0
    %434 = vrot.lane.b32.xlu0 %v431, 64
    %v435 = vpop.permute.xlu0 %434
    %v437 = vmul.f32 %v430, %v435
    %439 = vrot.lane.b32.xlu0 %v437, 32
    %v440 = vpop.permute.xlu0 %439
    %v442 = vadd.f32 %v432, %v440
    %v443 = vtanh.pop %v442
    %445 = vrot.lane.b32.xlu0 %v443, 64
    %v446 = vpop.permute.xlu0 %445
    %v448 = vmul.f32 %v430, %v446
    %v449 = vpack.c.bf16 %v448, %v448
    %451 = vrot.lane.b32.xlu0 %v449, 32
    %v452 = vpop.permute.xlu0 %451
    %v454 = vsel %vm60, %v452, 0
    %456 = vmatprep.subr.bf16.mxu0 0
    %457 = vmatpush1.bf16.msra.mxu0 %v240
    %458 = vmatprep.subr.bf16.mxu0 0
    %459 = vmatpush1.bf16.msra.mxu0 %v241
    %460 = vmatprep.subr.bf16.mxu0 0
    %461 = vmatpush1.bf16.msra.mxu0 0
    %462 = vmatprep.subr.bf16.mxu0 0
    %463 = vmatpush1.bf16.msra.mxu0 0
    %464 = vmatprep.subr.bf16.mxu0 0
    %465 = vmatpush1.bf16.msra.mxu0 0
    %466 = vmatprep.subr.bf16.mxu0 0
    %467 = vmatpush1.bf16.msra.mxu0 0
    %468 = vmatprep.subr.bf16.mxu0 0
    %469 = vmatpush1.bf16.msra.mxu0 0
    %470 = vmatprep.subr.bf16.mxu0 0
    %471 = vmatpush1.bf16.msra.mxu0 0
    %472 = vmatprep.subr.bf16.mxu0 0
    %473 = vmatpush1.bf16.msra.mxu0 0
    %474 = vmatprep.subr.bf16.mxu0 0
    %475 = vmatpush1.bf16.msra.mxu0 0
    %476 = vmatprep.subr.bf16.mxu0 0
    %477 = vmatpush1.bf16.msra.mxu0 0
    %478 = vmatprep.subr.bf16.mxu0 0
    %479 = vmatpush1.bf16.msra.mxu0 0
    %480 = vmatprep.subr.bf16.mxu0 0
    %481 = vmatpush1.bf16.msra.mxu0 0
    %482 = vmatprep.subr.bf16.mxu0 0
    %483 = vmatpush1.bf16.msra.mxu0 0
    %484 = vmatprep.subr.bf16.mxu0 0
    %485 = vmatpush1.bf16.msra.mxu0 0
    %486 = vmatprep.subr.bf16.mxu0 0
    %487 = vmatpush1.bf16.msra.mxu0 0
    %488 = vmatprep.mubr.bf16.mxu0 0
    %489 = vmatmul.mubr.bf16.gmra.mrb[0].mxu0 %v454
    %v490 = vpop.f32.mrb[0].mxu0
    %v491 = vadd.f32 0.0, %v490
    %v492 = vpop.f32.mrb[0].mxu0
    %v493 = vpop.f32.mrb[0].mxu0
    %v494 = vpop.f32.mrb[0].mxu0
    %495 = vdwg.mxu0
    %s496 = scalar_lea.vmem [#allocation2], 8
    %v497 = vld [vmem:[%s496] sm:$0xff]
    %498 = vmatprep.subr.bf16.mxu0 0
    %499 = vmatpush1.bf16.msra.mxu0 %v296
    %500 = vmatprep.subr.bf16.mxu0 0
    %501 = vmatpush1.bf16.msra.mxu0 %v297
    %502 = vmatprep.subr.bf16.mxu0 0
    %503 = vmatpush1.bf16.msra.mxu0 0
    %504 = vmatprep.subr.bf16.mxu0 0
    %505 = vmatpush1.bf16.msra.mxu0 0
    %506 = vmatprep.subr.bf16.mxu0 0
    %507 = vmatpush1.bf16.msra.mxu0 0
    %508 = vmatprep.subr.bf16.mxu0 0
    %509 = vmatpush1.bf16.msra.mxu0 0
    %510 = vmatprep.subr.bf16.mxu0 0
    %511 = vmatpush1.bf16.msra.mxu0 0
    %512 = vmatprep.subr.bf16.mxu0 0
    %513 = vmatpush1.bf16.msra.mxu0 0
    %514 = vmatprep.subr.bf16.mxu0 0
    %515 = vmatpush1.bf16.msra.mxu0 0
    %516 = vmatprep.subr.bf16.mxu0 0
    %517 = vmatpush1.bf16.msra.mxu0 0
    %518 = vmatprep.subr.bf16.mxu0 0
    %519 = vmatpush1.bf16.msra.mxu0 0
    %520 = vmatprep.subr.bf16.mxu0 0
    %521 = vmatpush1.bf16.msra.mxu0 0
    %522 = vmatprep.subr.bf16.mxu0 0
    %523 = vmatpush1.bf16.msra.mxu0 0
    %524 = vmatprep.subr.bf16.mxu0 0
    %525 = vmatpush1.bf16.msra.mxu0 0
    %526 = vmatprep.subr.bf16.mxu0 0
    %527 = vmatpush1.bf16.msra.mxu0 0
    %528 = vmatprep.subr.bf16.mxu0 0
    %529 = vmatpush1.bf16.msra.mxu0 0
    %530 = vmatprep.mubr.bf16.mxu0 0
    %531 = vmatmul.mubr.bf16.gmra.mrb[0].mxu0 %v382
    %v532 = vpop.f32.mrb[0].mxu0
    %v533 = vadd.f32 0.0, %v532
    %v534 = vpop.f32.mrb[0].mxu0
    %v535 = vpop.f32.mrb[0].mxu0
    %v536 = vpop.f32.mrb[0].mxu0
    %537 = vdwg.mxu0
    %v538 = vadd.f32 %v497, %v533
    %v539 = vxor.u32 %v538, 2147483648
    %v540 = vmul.f32 %v539, 1.442695
    %v541 = vpow.pop %v540
    %v542 = vadd.f32 %v541, 1.0
    %v543 = vrcp.pop %v542
    %v544 = vmul.f32 1.0, %v543
    %v545 = vtanh.pop %v538
    %v546 = vmul.f32 %v544, %v358
    %548 = vrot.lane.b32.xlu0 %v545, 64
    %v549 = vpop.permute.xlu0 %548
    %v551 = vmul.f32 %v544, %v549
    %553 = vrot.lane.b32.xlu0 %v551, 32
    %v554 = vpop.permute.xlu0 %553
    %v556 = vadd.f32 %v546, %v554
    %v557 = vtanh.pop %v556
    %559 = vrot.lane.b32.xlu0 %v557, 64
    %v560 = vpop.permute.xlu0 %559
    %v562 = vmul.f32 %v544, %v560
    %v563 = vpack.c.bf16 %v562, %v562
    %565 = vrot.lane.b32.xlu0 %v563, 32
    %v566 = vpop.permute.xlu0 %565
    %v568 = vsel %vm60, %v566, 0
    %570 = vmatprep.subr.bf16.mxu0 0
    %571 = vmatpush1.bf16.msra.mxu0 %v377
    %572 = vmatprep.subr.bf16.mxu0 0
    %573 = vmatpush1.bf16.msra.mxu0 %v378
    %574 = vmatprep.subr.bf16.mxu0 0
    %575 = vmatpush1.bf16.msra.mxu0 0
    %576 = vmatprep.subr.bf16.mxu0 0
    %577 = vmatpush1.bf16.msra.mxu0 0
    %578 = vmatprep.subr.bf16.mxu0 0
    %579 = vmatpush1.bf16.msra.mxu0 0
    %580 = vmatprep.subr.bf16.mxu0 0
    %581 = vmatpush1.bf16.msra.mxu0 0
    %582 = vmatprep.subr.bf16.mxu0 0
    %583 = vmatpush1.bf16.msra.mxu0 0
    %584 = vmatprep.subr.bf16.mxu0 0
    %585 = vmatpush1.bf16.msra.mxu0 0
    %586 = vmatprep.subr.bf16.mxu0 0
    %587 = vmatpush1.bf16.msra.mxu0 0
    %588 = vmatprep.subr.bf16.mxu0 0
    %589 = vmatpush1.bf16.msra.mxu0 0
    %590 = vmatprep.subr.bf16.mxu0 0
    %591 = vmatpush1.bf16.msra.mxu0 0
    %592 = vmatprep.subr.bf16.mxu0 0
    %593 = vmatpush1.bf16.msra.mxu0 0
    %594 = vmatprep.subr.bf16.mxu0 0
    %595 = vmatpush1.bf16.msra.mxu0 0
    %596 = vmatprep.subr.bf16.mxu0 0
    %597 = vmatpush1.bf16.msra.mxu0 0
    %598 = vmatprep.subr.bf16.mxu0 0
    %599 = vmatpush1.bf16.msra.mxu0 0
    %600 = vmatprep.subr.bf16.mxu0 0
    %601 = vmatpush1.bf16.msra.mxu0 0
    %602 = vmatprep.mubr.bf16.mxu0 0
    %603 = vmatmul.mubr.bf16.gmra.mrb[0].mxu0 %v568
    %v604 = vpop.f32.mrb[0].mxu0
    %v605 = vadd.f32 %v491, %v604
    %v606 = vpop.f32.mrb[0].mxu0
    %v607 = vpop.f32.mrb[0].mxu0
    %v608 = vpop.f32.mrb[0].mxu0
    %609 = vdwg.mxu0
    %v610 = vadd.f32 %v605, %v230
    %v611 = vxor.u32 %v610, 2147483648
    %v612 = vmul.f32 %v611, 1.442695
    %v613 = vpow.pop %v612
    %v614 = vadd.f32 %v613, 1.0
    %v615 = vrcp.pop %v614
    %v616 = vmul.f32 1.0, %v615
    %v617 = vtanh.pop %v610
    %v618 = vmul.f32 %v616, %v442
    %620 = vrot.lane.b32.xlu0 %v617, 64
    %v621 = vpop.permute.xlu0 %620
    %v623 = vmul.f32 %v616, %v621
    %625 = vrot.lane.b32.xlu0 %v623, 32
    %v626 = vpop.permute.xlu0 %625
    %v628 = vadd.f32 %v618, %v626
    %v629 = vtanh.pop %v628
    %631 = vrot.lane.b32.xlu0 %v629, 64
    %v632 = vpop.permute.xlu0 %631
    %v634 = vmul.f32 %v616, %v632
    %v635 = vpack.c.bf16 %v634, %v634
    %637 = vrot.lane.b32.xlu0 %v635, 32
    %v638 = vpop.permute.xlu0 %637
    %v640 = vsel %vm60, %v638, 0
    %642 = vmatprep.subr.bf16.mxu0 0
    %643 = vmatpush1.bf16.msra.mxu0 %v240
    %644 = vmatprep.subr.bf16.mxu0 0
    %645 = vmatpush1.bf16.msra.mxu0 %v241
    %646 = vmatprep.subr.bf16.mxu0 0
    %647 = vmatpush1.bf16.msra.mxu0 0
    %648 = vmatprep.subr.bf16.mxu0 0
    %649 = vmatpush1.bf16.msra.mxu0 0
    %650 = vmatprep.subr.bf16.mxu0 0
    %651 = vmatpush1.bf16.msra.mxu0 0
    %652 = vmatprep.subr.bf16.mxu0 0
    %653 = vmatpush1.bf16.msra.mxu0 0
    %654 = vmatprep.subr.bf16.mxu0 0
    %655 = vmatpush1.bf16.msra.mxu0 0
    %656 = vmatprep.subr.bf16.mxu0 0
    %657 = vmatpush1.bf16.msra.mxu0 0
    %658 = vmatprep.subr.bf16.mxu0 0
    %659 = vmatpush1.bf16.msra.mxu0 0
    %660 = vmatprep.subr.bf16.mxu0 0
    %661 = vmatpush1.bf16.msra.mxu0 0
    %662 = vmatprep.subr.bf16.mxu0 0
    %663 = vmatpush1.bf16.msra.mxu0 0
    %664 = vmatprep.subr.bf16.mxu0 0
    %665 = vmatpush1.bf16.msra.mxu0 0
    %666 = vmatprep.subr.bf16.mxu0 0
    %667 = vmatpush1.bf16.msra.mxu0 0
    %668 = vmatprep.subr.bf16.mxu0 0
    %669 = vmatpush1.bf16.msra.mxu0 0
    %670 = vmatprep.subr.bf16.mxu0 0
    %671 = vmatpush1.bf16.msra.mxu0 0
    %672 = vmatprep.subr.bf16.mxu0 0
    %673 = vmatpush1.bf16.msra.mxu0 0
    %674 = vmatprep.mubr.bf16.mxu0 0
    %675 = vmatmul.mubr.bf16.gmra.mrb[0].mxu0 %v640
    %v676 = vpop.f32.mrb[0].mxu0
    %v677 = vadd.f32 0.0, %v676
    %v678 = vpop.f32.mrb[0].mxu0
    %v679 = vpop.f32.mrb[0].mxu0
    %v680 = vpop.f32.mrb[0].mxu0
    %681 = vdwg.mxu0
    %s682 = scalar_lea.vmem [#allocation2], 16
    %v683 = vld [vmem:[%s682] sm:$0xff]
    %684 = vmatprep.subr.bf16.mxu0 0
    %685 = vmatpush1.bf16.msra.mxu0 %v296
    %686 = vmatprep.subr.bf16.mxu0 0
    %687 = vmatpush1.bf16.msra.mxu0 %v297
    %688 = vmatprep.subr.bf16.mxu0 0
    %689 = vmatpush1.bf16.msra.mxu0 0
    %690 = vmatprep.subr.bf16.mxu0 0
    %691 = vmatpush1.bf16.msra.mxu0 0
    %692 = vmatprep.subr.bf16.mxu0 0
    %693 = vmatpush1.bf16.msra.mxu0 0
    %694 = vmatprep.subr.bf16.mxu0 0
    %695 = vmatpush1.bf16.msra.mxu0 0
    %696 = vmatprep.subr.bf16.mxu0 0
    %697 = vmatpush1.bf16.msra.mxu0 0
    %698 = vmatprep.subr.bf16.mxu0 0
    %699 = vmatpush1.bf16.msra.mxu0 0
    %700 = vmatprep.subr.bf16.mxu0 0
    %701 = vmatpush1.bf16.msra.mxu0 0
    %702 = vmatprep.subr.bf16.mxu0 0
    %703 = vmatpush1.bf16.msra.mxu0 0
    %704 = vmatprep.subr.bf16.mxu0 0
    %705 = vmatpush1.bf16.msra.mxu0 0
    %706 = vmatprep.subr.bf16.mxu0 0
    %707 = vmatpush1.bf16.msra.mxu0 0
    %708 = vmatprep.subr.bf16.mxu0 0
    %709 = vmatpush1.bf16.msra.mxu0 0
    %710 = vmatprep.subr.bf16.mxu0 0
    %711 = vmatpush1.bf16.msra.mxu0 0
    %712 = vmatprep.subr.bf16.mxu0 0
    %713 = vmatpush1.bf16.msra.mxu0 0
    %714 = vmatprep.subr.bf16.mxu0 0
    %715 = vmatpush1.bf16.msra.mxu0 0
    %716 = vmatprep.mubr.bf16.mxu0 0
    %717 = vmatmul.mubr.bf16.gmra.mrb[0].mxu0 %v568
    %v718 = vpop.f32.mrb[0].mxu0
    %v719 = vadd.f32 0.0, %v718
    %v720 = vpop.f32.mrb[0].mxu0
    %v721 = vpop.f32.mrb[0].mxu0
    %v722 = vpop.f32.mrb[0].mxu0
    %723 = vdwg.mxu0
    %v724 = vadd.f32 %v683, %v719
    %v725 = vxor.u32 %v724, 2147483648
    %v726 = vmul.f32 %v725, 1.442695
    %v727 = vpow.pop %v726
    %v728 = vadd.f32 %v727, 1.0
    %v729 = vrcp.pop %v728
    %v730 = vmul.f32 1.0, %v729
    %v731 = vtanh.pop %v724
    %v732 = vmul.f32 %v730, %v556
    %734 = vrot.lane.b32.xlu0 %v731, 64
    %v735 = vpop.permute.xlu0 %734
    %v737 = vmul.f32 %v730, %v735
    %739 = vrot.lane.b32.xlu0 %v737, 32
    %v740 = vpop.permute.xlu0 %739
    %v742 = vadd.f32 %v732, %v740
    %v743 = vtanh.pop %v742
    %745 = vrot.lane.b32.xlu0 %v743, 64
    %v746 = vpop.permute.xlu0 %745
    %v748 = vmul.f32 %v730, %v746
    %v749 = vpack.c.bf16 %v748, %v748
    %751 = vrot.lane.b32.xlu0 %v749, 32
    %v752 = vpop.permute.xlu0 %751
    %v754 = vsel %vm60, %v752, 0
    %756 = vmatprep.subr.bf16.mxu0 0
    %757 = vmatpush1.bf16.msra.mxu0 %v377
    %758 = vmatprep.subr.bf16.mxu0 0
    %759 = vmatpush1.bf16.msra.mxu0 %v378
    %760 = vmatprep.subr.bf16.mxu0 0
    %761 = vmatpush1.bf16.msra.mxu0 0
    %762 = vmatprep.subr.bf16.mxu0 0
    %763 = vmatpush1.bf16.msra.mxu0 0
    %764 = vmatprep.subr.bf16.mxu0 0
    %765 = vmatpush1.bf16.msra.mxu0 0
    %766 = vmatprep.subr.bf16.mxu0 0
    %767 = vmatpush1.bf16.msra.mxu0 0
    %768 = vmatprep.subr.bf16.mxu0 0
    %769 = vmatpush1.bf16.msra.mxu0 0
    %770 = vmatprep.subr.bf16.mxu0 0
    %771 = vmatpush1.bf16.msra.mxu0 0
    %772 = vmatprep.subr.bf16.mxu0 0
    %773 = vmatpush1.bf16.msra.mxu0 0
    %774 = vmatprep.subr.bf16.mxu0 0
    %775 = vmatpush1.bf16.msra.mxu0 0
    %776 = vmatprep.subr.bf16.mxu0 0
    %777 = vmatpush1.bf16.msra.mxu0 0
    %778 = vmatprep.subr.bf16.mxu0 0
    %779 = vmatpush1.bf16.msra.mxu0 0
    %780 = vmatprep.subr.bf16.mxu0 0
    %781 = vmatpush1.bf16.msra.mxu0 0
    %782 = vmatprep.subr.bf16.mxu0 0
    %783 = vmatpush1.bf16.msra.mxu0 0
    %784 = vmatprep.subr.bf16.mxu0 0
    %785 = vmatpush1.bf16.msra.mxu0 0
    %786 = vmatprep.subr.bf16.mxu0 0
    %787 = vmatpush1.bf16.msra.mxu0 0
    %788 = vmatprep.mubr.bf16.mxu0 0
    %789 = vmatmul.mubr.bf16.gmra.mrb[0].mxu0 %v754
    %v790 = vpop.f32.mrb[0].mxu0
    %v791 = vadd.f32 %v677, %v790
    %v792 = vpop.f32.mrb[0].mxu0
    %v793 = vpop.f32.mrb[0].mxu0
    %v794 = vpop.f32.mrb[0].mxu0
    %795 = vdwg.mxu0
    %v796 = vadd.f32 %v791, %v230
    %v797 = vxor.u32 %v796, 2147483648
    %v798 = vmul.f32 %v797, 1.442695
    %v799 = vpow.pop %v798
    %v800 = vadd.f32 %v799, 1.0
    %v801 = vrcp.pop %v800
    %v802 = vmul.f32 1.0, %v801
    %v803 = vtanh.pop %v796
    %v804 = vmul.f32 %v802, %v628
    %806 = vrot.lane.b32.xlu0 %v803, 64
    %v807 = vpop.permute.xlu0 %806
    %v809 = vmul.f32 %v802, %v807
    %811 = vrot.lane.b32.xlu0 %v809, 32
    %v812 = vpop.permute.xlu0 %811
    %v814 = vadd.f32 %v804, %v812
    %v815 = vtanh.pop %v814
    %817 = vrot.lane.b32.xlu0 %v815, 64
    %v818 = vpop.permute.xlu0 %817
    %v820 = vmul.f32 %v802, %v818
    %v821 = vpack.c.bf16 %v820, %v820
    %823 = vrot.lane.b32.xlu0 %v821, 32
    %v824 = vpop.permute.xlu0 %823
    %v826 = vsel %vm60, %v824, 0
    %828 = vmatprep.subr.bf16.mxu0 0
    %829 = vmatpush1.bf16.msra.mxu0 %v240
    %830 = vmatprep.subr.bf16.mxu0 0
    %831 = vmatpush1.bf16.msra.mxu0 %v241
    %832 = vmatprep.subr.bf16.mxu0 0
    %833 = vmatpush1.bf16.msra.mxu0 0
    %834 = vmatprep.subr.bf16.mxu0 0
    %835 = vmatpush1.bf16.msra.mxu0 0
    %836 = vmatprep.subr.bf16.mxu0 0
    %837 = vmatpush1.bf16.msra.mxu0 0
    %838 = vmatprep.subr.bf16.mxu0 0
    %839 = vmatpush1.bf16.msra.mxu0 0
    %840 = vmatprep.subr.bf16.mxu0 0
    %841 = vmatpush1.bf16.msra.mxu0 0
    %842 = vmatprep.subr.bf16.mxu0 0
    %843 = vmatpush1.bf16.msra.mxu0 0
    %844 = vmatprep.subr.bf16.mxu0 0
    %845 = vmatpush1.bf16.msra.mxu0 0
    %846 = vmatprep.subr.bf16.mxu0 0
    %847 = vmatpush1.bf16.msra.mxu0 0
    %848 = vmatprep.subr.bf16.mxu0 0
    %849 = vmatpush1.bf16.msra.mxu0 0
    %850 = vmatprep.subr.bf16.mxu0 0
    %851 = vmatpush1.bf16.msra.mxu0 0
    %852 = vmatprep.subr.bf16.mxu0 0
    %853 = vmatpush1.bf16.msra.mxu0 0
    %854 = vmatprep.subr.bf16.mxu0 0
    %855 = vmatpush1.bf16.msra.mxu0 0
    %856 = vmatprep.subr.bf16.mxu0 0
    %857 = vmatpush1.bf16.msra.mxu0 0
    %858 = vmatprep.subr.bf16.mxu0 0
    %859 = vmatpush1.bf16.msra.mxu0 0
    %860 = vmatprep.mubr.bf16.mxu0 0
    %861 = vmatmul.mubr.bf16.gmra.mrb[0].mxu0 %v826
    %v862 = vpop.f32.mrb[0].mxu0
    %v863 = vadd.f32 0.0, %v862
    %v864 = vpop.f32.mrb[0].mxu0
    %v865 = vpop.f32.mrb[0].mxu0
    %v866 = vpop.f32.mrb[0].mxu0
    %867 = vdwg.mxu0
    %s868 = scalar_lea.vmem [#allocation2], 24
    %v869 = vld [vmem:[%s868] sm:$0xff]
    %870 = vmatprep.subr.bf16.mxu0 0
    %871 = vmatpush1.bf16.msra.mxu0 %v296
    %872 = vmatprep.subr.bf16.mxu0 0
    %873 = vmatpush1.bf16.msra.mxu0 %v297
    %874 = vmatprep.subr.bf16.mxu0 0
    %875 = vmatpush1.bf16.msra.mxu0 0
    %876 = vmatprep.subr.bf16.mxu0 0
    %877 = vmatpush1.bf16.msra.mxu0 0
    %878 = vmatprep.subr.bf16.mxu0 0
    %879 = vmatpush1.bf16.msra.mxu0 0
    %880 = vmatprep.subr.bf16.mxu0 0
    %881 = vmatpush1.bf16.msra.mxu0 0
    %882 = vmatprep.subr.bf16.mxu0 0
    %883 = vmatpush1.bf16.msra.mxu0 0
    %884 = vmatprep.subr.bf16.mxu0 0
    %885 = vmatpush1.bf16.msra.mxu0 0
    %886 = vmatprep.subr.bf16.mxu0 0
    %887 = vmatpush1.bf16.msra.mxu0 0
    %888 = vmatprep.subr.bf16.mxu0 0
    %889 = vmatpush1.bf16.msra.mxu0 0
    %890 = vmatprep.subr.bf16.mxu0 0
    %891 = vmatpush1.bf16.msra.mxu0 0
    %892 = vmatprep.subr.bf16.mxu0 0
    %893 = vmatpush1.bf16.msra.mxu0 0
    %894 = vmatprep.subr.bf16.mxu0 0
    %895 = vmatpush1.bf16.msra.mxu0 0
    %896 = vmatprep.subr.bf16.mxu0 0
    %897 = vmatpush1.bf16.msra.mxu0 0
    %898 = vmatprep.subr.bf16.mxu0 0
    %899 = vmatpush1.bf16.msra.mxu0 0
    %900 = vmatprep.subr.bf16.mxu0 0
    %901 = vmatpush1.bf16.msra.mxu0 0
    %902 = vmatprep.mubr.bf16.mxu0 0
    %903 = vmatmul.mubr.bf16.gmra.mrb[0].mxu0 %v754
    %v904 = vpop.f32.mrb[0].mxu0
    %v905 = vadd.f32 0.0, %v904
    %v906 = vpop.f32.mrb[0].mxu0
    %v907 = vpop.f32.mrb[0].mxu0
    %v908 = vpop.f32.mrb[0].mxu0
    %909 = vdwg.mxu0
    %v910 = vadd.f32 %v869, %v905
    %v911 = vxor.u32 %v910, 2147483648
    %v912 = vmul.f32 %v911, 1.442695
    %v913 = vpow.pop %v912
    %v914 = vadd.f32 %v913, 1.0
    %v915 = vrcp.pop %v914
    %v916 = vmul.f32 1.0, %v915
    %v917 = vtanh.pop %v910
    %v918 = vmul.f32 %v916, %v742
    %920 = vrot.lane.b32.xlu0 %v917, 64
    %v921 = vpop.permute.xlu0 %920
    %v923 = vmul.f32 %v916, %v921
    %925 = vrot.lane.b32.xlu0 %v923, 32
    %v926 = vpop.permute.xlu0 %925
    %v928 = vadd.f32 %v918, %v926
    %v929 = vtanh.pop %v928
    %931 = vrot.lane.b32.xlu0 %v929, 64
    %v932 = vpop.permute.xlu0 %931
    %v934 = vmul.f32 %v916, %v932
    %v935 = vpack.c.bf16 %v934, %v934
    %937 = vrot.lane.b32.xlu0 %v935, 32
    %v938 = vpop.permute.xlu0 %937
    %v940 = vsel %vm60, %v938, 0
    %942 = vmatprep.subr.bf16.mxu0 0
    %943 = vmatpush1.bf16.msra.mxu0 %v377
    %944 = vmatprep.subr.bf16.mxu0 0
    %945 = vmatpush1.bf16.msra.mxu0 %v378
    %946 = vmatprep.subr.bf16.mxu0 0
    %947 = vmatpush1.bf16.msra.mxu0 0
    %948 = vmatprep.subr.bf16.mxu0 0
    %949 = vmatpush1.bf16.msra.mxu0 0
    %950 = vmatprep.subr.bf16.mxu0 0
    %951 = vmatpush1.bf16.msra.mxu0 0
    %952 = vmatprep.subr.bf16.mxu0 0
    %953 = vmatpush1.bf16.msra.mxu0 0
    %954 = vmatprep.subr.bf16.mxu0 0
    %955 = vmatpush1.bf16.msra.mxu0 0
    %956 = vmatprep.subr.bf16.mxu0 0
    %957 = vmatpush1.bf16.msra.mxu0 0
    %958 = vmatprep.subr.bf16.mxu0 0
    %959 = vmatpush1.bf16.msra.mxu0 0
    %960 = vmatprep.subr.bf16.mxu0 0
    %961 = vmatpush1.bf16.msra.mxu0 0
    %962 = vmatprep.subr.bf16.mxu0 0
    %963 = vmatpush1.bf16.msra.mxu0 0
    %964 = vmatprep.subr.bf16.mxu0 0
    %965 = vmatpush1.bf16.msra.mxu0 0
    %966 = vmatprep.subr.bf16.mxu0 0
    %967 = vmatpush1.bf16.msra.mxu0 0
    %968 = vmatprep.subr.bf16.mxu0 0
    %969 = vmatpush1.bf16.msra.mxu0 0
    %970 = vmatprep.subr.bf16.mxu0 0
    %971 = vmatpush1.bf16.msra.mxu0 0
    %972 = vmatprep.subr.bf16.mxu0 0
    %973 = vmatpush1.bf16.msra.mxu0 0
    %974 = vmatprep.mubr.bf16.mxu0 0
    %975 = vmatmul.mubr.bf16.gmra.mrb[0].mxu0 %v940
    %v976 = vpop.f32.mrb[0].mxu0
    %v977 = vadd.f32 %v863, %v976
    %v978 = vpop.f32.mrb[0].mxu0
    %v979 = vpop.f32.mrb[0].mxu0
    %v980 = vpop.f32.mrb[0].mxu0
    %981 = vdwg.mxu0
    %v982 = vadd.f32 %v977, %v230
    %v983 = vxor.u32 %v982, 2147483648
    %v984 = vmul.f32 %v983, 1.442695
    %v985 = vpow.pop %v984
    %v986 = vadd.f32 %v985, 1.0
    %v987 = vrcp.pop %v986
    %v988 = vmul.f32 1.0, %v987
    %v989 = vtanh.pop %v982
    %v990 = vmul.f32 %v988, %v814
    %992 = vrot.lane.b32.xlu0 %v989, 64
    %v993 = vpop.permute.xlu0 %992
    %v995 = vmul.f32 %v988, %v993
    %997 = vrot.lane.b32.xlu0 %v995, 32
    %v998 = vpop.permute.xlu0 %997
    %v1000 = vadd.f32 %v990, %v998
    %v1001 = vtanh.pop %v1000
    %1003 = vrot.lane.b32.xlu0 %v1001, 64
    %v1004 = vpop.permute.xlu0 %1003
    %v1006 = vmul.f32 %v988, %v1004
    %v1007 = vpack.c.bf16 %v1006, %v1006
    %1009 = vrot.lane.b32.xlu0 %v1007, 32
    %v1010 = vpop.permute.xlu0 %1009
    %v1012 = vsel %vm60, %v1010, 0
    %1014 = vmatprep.subr.bf16.mxu0 0
    %1015 = vmatpush1.bf16.msra.mxu0 %v240
    %1016 = vmatprep.subr.bf16.mxu0 0
    %1017 = vmatpush1.bf16.msra.mxu0 %v241
    %1018 = vmatprep.subr.bf16.mxu0 0
    %1019 = vmatpush1.bf16.msra.mxu0 0
    %1020 = vmatprep.subr.bf16.mxu0 0
    %1021 = vmatpush1.bf16.msra.mxu0 0
    %1022 = vmatprep.subr.bf16.mxu0 0
    %1023 = vmatpush1.bf16.msra.mxu0 0
    %1024 = vmatprep.subr.bf16.mxu0 0
    %1025 = vmatpush1.bf16.msra.mxu0 0
    %1026 = vmatprep.subr.bf16.mxu0 0
    %1027 = vmatpush1.bf16.msra.mxu0 0
    %1028 = vmatprep.subr.bf16.mxu0 0
    %1029 = vmatpush1.bf16.msra.mxu0 0
    %1030 = vmatprep.subr.bf16.mxu0 0
    %1031 = vmatpush1.bf16.msra.mxu0 0
    %1032 = vmatprep.subr.bf16.mxu0 0
    %1033 = vmatpush1.bf16.msra.mxu0 0
    %1034 = vmatprep.subr.bf16.mxu0 0
    %1035 = vmatpush1.bf16.msra.mxu0 0
    %1036 = vmatprep.subr.bf16.mxu0 0
    %1037 = vmatpush1.bf16.msra.mxu0 0
    %1038 = vmatprep.subr.bf16.mxu0 0
    %1039 = vmatpush1.bf16.msra.mxu0 0
    %1040 = vmatprep.subr.bf16.mxu0 0
    %1041 = vmatpush1.bf16.msra.mxu0 0
    %1042 = vmatprep.subr.bf16.mxu0 0
    %1043 = vmatpush1.bf16.msra.mxu0 0
    %1044 = vmatprep.subr.bf16.mxu0 0
    %1045 = vmatpush1.bf16.msra.mxu0 0
    %1046 = vmatprep.mubr.bf16.mxu0 0
    %1047 = vmatmul.mubr.bf16.gmra.mrb[0].mxu0 %v1012
    %v1048 = vpop.f32.mrb[0].mxu0
    %v1049 = vadd.f32 0.0, %v1048
    %v1050 = vpop.f32.mrb[0].mxu0
    %v1051 = vpop.f32.mrb[0].mxu0
    %v1052 = vpop.f32.mrb[0].mxu0
    %1053 = vdwg.mxu0
    %s1054 = scalar_lea.vmem [#allocation2], 32
    %v1055 = vld [vmem:[%s1054] sm:$0xff]
    %1056 = vmatprep.subr.bf16.mxu0 0
    %1057 = vmatpush1.bf16.msra.mxu0 %v296
    %1058 = vmatprep.subr.bf16.mxu0 0
    %1059 = vmatpush1.bf16.msra.mxu0 %v297
    %1060 = vmatprep.subr.bf16.mxu0 0
    %1061 = vmatpush1.bf16.msra.mxu0 0
    %1062 = vmatprep.subr.bf16.mxu0 0
    %1063 = vmatpush1.bf16.msra.mxu0 0
    %1064 = vmatprep.subr.bf16.mxu0 0
    %1065 = vmatpush1.bf16.msra.mxu0 0
    %1066 = vmatprep.subr.bf16.mxu0 0
    %1067 = vmatpush1.bf16.msra.mxu0 0
    %1068 = vmatprep.subr.bf16.mxu0 0
    %1069 = vmatpush1.bf16.msra.mxu0 0
    %1070 = vmatprep.subr.bf16.mxu0 0
    %1071 = vmatpush1.bf16.msra.mxu0 0
    %1072 = vmatprep.subr.bf16.mxu0 0
    %1073 = vmatpush1.bf16.msra.mxu0 0
    %1074 = vmatprep.subr.bf16.mxu0 0
    %1075 = vmatpush1.bf16.msra.mxu0 0
    %1076 = vmatprep.subr.bf16.mxu0 0
    %1077 = vmatpush1.bf16.msra.mxu0 0
    %1078 = vmatprep.subr.bf16.mxu0 0
    %1079 = vmatpush1.bf16.msra.mxu0 0
    %1080 = vmatprep.subr.bf16.mxu0 0
    %1081 = vmatpush1.bf16.msra.mxu0 0
    %1082 = vmatprep.subr.bf16.mxu0 0
    %1083 = vmatpush1.bf16.msra.mxu0 0
    %1084 = vmatprep.subr.bf16.mxu0 0
    %1085 = vmatpush1.bf16.msra.mxu0 0
    %1086 = vmatprep.subr.bf16.mxu0 0
    %1087 = vmatpush1.bf16.msra.mxu0 0
    %1088 = vmatprep.mubr.bf16.mxu0 0
    %1089 = vmatmul.mubr.bf16.gmra.mrb[0].mxu0 %v940
    %v1090 = vpop.f32.mrb[0].mxu0
    %v1091 = vadd.f32 0.0, %v1090
    %v1092 = vpop.f32.mrb[0].mxu0
    %v1093 = vpop.f32.mrb[0].mxu0
    %v1094 = vpop.f32.mrb[0].mxu0
    %1095 = vdwg.mxu0
    %v1096 = vadd.f32 %v1055, %v1091
    %v1097 = vxor.u32 %v1096, 2147483648
    %v1098 = vmul.f32 %v1097, 1.442695
    %v1099 = vpow.pop %v1098
    %v1100 = vadd.f32 %v1099, 1.0
    %v1101 = vrcp.pop %v1100
    %v1102 = vmul.f32 1.0, %v1101
    %v1103 = vtanh.pop %v1096
    %v1104 = vmul.f32 %v1102, %v928
    %1106 = vrot.lane.b32.xlu0 %v1103, 64
    %v1107 = vpop.permute.xlu0 %1106
    %v1109 = vmul.f32 %v1102, %v1107
    %1111 = vrot.lane.b32.xlu0 %v1109, 32
    %v1112 = vpop.permute.xlu0 %1111
    %v1114 = vadd.f32 %v1104, %v1112
    %v1115 = vtanh.pop %v1114
    %1117 = vrot.lane.b32.xlu0 %v1115, 64
    %v1118 = vpop.permute.xlu0 %1117
    %v1120 = vmul.f32 %v1102, %v1118
    %v1121 = vpack.c.bf16 %v1120, %v1120
    %1123 = vrot.lane.b32.xlu0 %v1121, 32
    %v1124 = vpop.permute.xlu0 %1123
    %v1126 = vsel %vm60, %v1124, 0
    %1128 = vmatprep.subr.bf16.mxu0 0
    %1129 = vmatpush1.bf16.msra.mxu0 %v377
    %1130 = vmatprep.subr.bf16.mxu0 0
    %1131 = vmatpush1.bf16.msra.mxu0 %v378
    %1132 = vmatprep.subr.bf16.mxu0 0
    %1133 = vmatpush1.bf16.msra.mxu0 0
    %1134 = vmatprep.subr.bf16.mxu0 0
    %1135 = vmatpush1.bf16.msra.mxu0 0
    %1136 = vmatprep.subr.bf16.mxu0 0
    %1137 = vmatpush1.bf16.msra.mxu0 0
    %1138 = vmatprep.subr.bf16.mxu0 0
    %1139 = vmatpush1.bf16.msra.mxu0 0
    %1140 = vmatprep.subr.bf16.mxu0 0
    %1141 = vmatpush1.bf16.msra.mxu0 0
    %1142 = vmatprep.subr.bf16.mxu0 0
    %1143 = vmatpush1.bf16.msra.mxu0 0
    %1144 = vmatprep.subr.bf16.mxu0 0
    %1145 = vmatpush1.bf16.msra.mxu0 0
    %1146 = vmatprep.subr.bf16.mxu0 0
    %1147 = vmatpush1.bf16.msra.mxu0 0
    %1148 = vmatprep.subr.bf16.mxu0 0
    %1149 = vmatpush1.bf16.msra.mxu0 0
    %1150 = vmatprep.subr.bf16.mxu0 0
    %1151 = vmatpush1.bf16.msra.mxu0 0
    %1152 = vmatprep.subr.bf16.mxu0 0
    %1153 = vmatpush1.bf16.msra.mxu0 0
    %1154 = vmatprep.subr.bf16.mxu0 0
    %1155 = vmatpush1.bf16.msra.mxu0 0
    %1156 = vmatprep.subr.bf16.mxu0 0
    %1157 = vmatpush1.bf16.msra.mxu0 0
    %1158 = vmatprep.subr.bf16.mxu0 0
    %1159 = vmatpush1.bf16.msra.mxu0 0
    %1160 = vmatprep.mubr.bf16.mxu0 0
    %1161 = vmatmul.mubr.bf16.gmra.mrb[0].mxu0 %v1126
    %v1162 = vpop.f32.mrb[0].mxu0
    %v1163 = vadd.f32 %v1049, %v1162
    %v1164 = vpop.f32.mrb[0].mxu0
    %v1165 = vpop.f32.mrb[0].mxu0
    %v1166 = vpop.f32.mrb[0].mxu0
    %1167 = vdwg.mxu0
    %v1168 = vadd.f32 %v1163, %v230
    %v1169 = vxor.u32 %v1168, 2147483648
    %v1170 = vmul.f32 %v1169, 1.442695
    %v1171 = vpow.pop %v1170
    %v1172 = vadd.f32 %v1171, 1.0
    %v1173 = vrcp.pop %v1172
    %v1174 = vmul.f32 1.0, %v1173
    %v1175 = vtanh.pop %v1168
    %v1176 = vmul.f32 %v1174, %v1000
    %1178 = vrot.lane.b32.xlu0 %v1175, 64
    %v1179 = vpop.permute.xlu0 %1178
    %v1181 = vmul.f32 %v1174, %v1179
    %1183 = vrot.lane.b32.xlu0 %v1181, 32
    %v1184 = vpop.permute.xlu0 %1183
    %v1186 = vadd.f32 %v1176, %v1184
    %v1187 = vtanh.pop %v1186
    %1189 = vrot.lane.b32.xlu0 %v1187, 64
    %v1190 = vpop.permute.xlu0 %1189
    %v1192 = vmul.f32 %v1174, %v1190
    %v1193 = vpack.c.bf16 %v1192, %v1192
    %1195 = vrot.lane.b32.xlu0 %v1193, 32
    %v1196 = vpop.permute.xlu0 %1195
    %v1198 = vsel %vm60, %v1196, 0
    %1200 = vmatprep.subr.bf16.mxu0 0
    %1201 = vmatpush1.bf16.msra.mxu0 %v240
    %1202 = vmatprep.subr.bf16.mxu0 0
    %1203 = vmatpush1.bf16.msra.mxu0 %v241
    %1204 = vmatprep.subr.bf16.mxu0 0
    %1205 = vmatpush1.bf16.msra.mxu0 0
    %1206 = vmatprep.subr.bf16.mxu0 0
    %1207 = vmatpush1.bf16.msra.mxu0 0
    %1208 = vmatprep.subr.bf16.mxu0 0
    %1209 = vmatpush1.bf16.msra.mxu0 0
    %1210 = vmatprep.subr.bf16.mxu0 0
    %1211 = vmatpush1.bf16.msra.mxu0 0
    %1212 = vmatprep.subr.bf16.mxu0 0
    %1213 = vmatpush1.bf16.msra.mxu0 0
    %1214 = vmatprep.subr.bf16.mxu0 0
    %1215 = vmatpush1.bf16.msra.mxu0 0
    %1216 = vmatprep.subr.bf16.mxu0 0
    %1217 = vmatpush1.bf16.msra.mxu0 0
    %1218 = vmatprep.subr.bf16.mxu0 0
    %1219 = vmatpush1.bf16.msra.mxu0 0
    %1220 = vmatprep.subr.bf16.mxu0 0
    %1221 = vmatpush1.bf16.msra.mxu0 0
    %1222 = vmatprep.subr.bf16.mxu0 0
    %1223 = vmatpush1.bf16.msra.mxu0 0
    %1224 = vmatprep.subr.bf16.mxu0 0
    %1225 = vmatpush1.bf16.msra.mxu0 0
    %1226 = vmatprep.subr.bf16.mxu0 0
    %1227 = vmatpush1.bf16.msra.mxu0 0
    %1228 = vmatprep.subr.bf16.mxu0 0
    %1229 = vmatpush1.bf16.msra.mxu0 0
    %1230 = vmatprep.subr.bf16.mxu0 0
    %1231 = vmatpush1.bf16.msra.mxu0 0
    %1232 = vmatprep.mubr.bf16.mxu0 0
    %1233 = vmatmul.mubr.bf16.gmra.mrb[0].mxu0 %v1198
    %v1234 = vpop.f32.mrb[0].mxu0
    %v1235 = vadd.f32 0.0, %v1234
    %v1236 = vpop.f32.mrb[0].mxu0
    %v1237 = vpop.f32.mrb[0].mxu0
    %v1238 = vpop.f32.mrb[0].mxu0
    %1239 = vdwg.mxu0
    %s1240 = scalar_lea.vmem [#allocation2], 40
    %v1241 = vld [vmem:[%s1240] sm:$0xff]
    %1242 = vmatprep.subr.bf16.mxu0 0
    %1243 = vmatpush1.bf16.msra.mxu0 %v296
    %1244 = vmatprep.subr.bf16.mxu0 0
    %1245 = vmatpush1.bf16.msra.mxu0 %v297
    %1246 = vmatprep.subr.bf16.mxu0 0
    %1247 = vmatpush1.bf16.msra.mxu0 0
    %1248 = vmatprep.subr.bf16.mxu0 0
    %1249 = vmatpush1.bf16.msra.mxu0 0
    %1250 = vmatprep.subr.bf16.mxu0 0
    %1251 = vmatpush1.bf16.msra.mxu0 0
    %1252 = vmatprep.subr.bf16.mxu0 0
    %1253 = vmatpush1.bf16.msra.mxu0 0
    %1254 = vmatprep.subr.bf16.mxu0 0
    %1255 = vmatpush1.bf16.msra.mxu0 0
    %1256 = vmatprep.subr.bf16.mxu0 0
    %1257 = vmatpush1.bf16.msra.mxu0 0
    %1258 = vmatprep.subr.bf16.mxu0 0
    %1259 = vmatpush1.bf16.msra.mxu0 0
    %1260 = vmatprep.subr.bf16.mxu0 0
    %1261 = vmatpush1.bf16.msra.mxu0 0
    %1262 = vmatprep.subr.bf16.mxu0 0
    %1263 = vmatpush1.bf16.msra.mxu0 0
    %1264 = vmatprep.subr.bf16.mxu0 0
    %1265 = vmatpush1.bf16.msra.mxu0 0
    %1266 = vmatprep.subr.bf16.mxu0 0
    %1267 = vmatpush1.bf16.msra.mxu0 0
    %1268 = vmatprep.subr.bf16.mxu0 0
    %1269 = vmatpush1.bf16.msra.mxu0 0
    %1270 = vmatprep.subr.bf16.mxu0 0
    %1271 = vmatpush1.bf16.msra.mxu0 0
    %1272 = vmatprep.subr.bf16.mxu0 0
    %1273 = vmatpush1.bf16.msra.mxu0 0
    %1274 = vmatprep.mubr.bf16.mxu0 0
    %1275 = vmatmul.mubr.bf16.gmra.mrb[0].mxu0 %v1126
    %v1276 = vpop.f32.mrb[0].mxu0
    %v1277 = vadd.f32 0.0, %v1276
    %v1278 = vpop.f32.mrb[0].mxu0
    %v1279 = vpop.f32.mrb[0].mxu0
    %v1280 = vpop.f32.mrb[0].mxu0
    %1281 = vdwg.mxu0
    %v1282 = vadd.f32 %v1241, %v1277
    %v1283 = vxor.u32 %v1282, 2147483648
    %v1284 = vmul.f32 %v1283, 1.442695
    %v1285 = vpow.pop %v1284
    %v1286 = vadd.f32 %v1285, 1.0
    %v1287 = vrcp.pop %v1286
    %v1288 = vmul.f32 1.0, %v1287
    %v1289 = vtanh.pop %v1282
    %v1290 = vmul.f32 %v1288, %v1114
    %1292 = vrot.lane.b32.xlu0 %v1289, 64
    %v1293 = vpop.permute.xlu0 %1292
    %v1295 = vmul.f32 %v1288, %v1293
    %1297 = vrot.lane.b32.xlu0 %v1295, 32
    %v1298 = vpop.permute.xlu0 %1297
    %v1300 = vadd.f32 %v1290, %v1298
    %v1301 = vtanh.pop %v1300
    %1303 = vrot.lane.b32.xlu0 %v1301, 64
    %v1304 = vpop.permute.xlu0 %1303
    %v1306 = vmul.f32 %v1288, %v1304
    %v1307 = vpack.c.bf16 %v1306, %v1306
    %1309 = vrot.lane.b32.xlu0 %v1307, 32
    %v1310 = vpop.permute.xlu0 %1309
    %v1312 = vsel %vm60, %v1310, 0
    %1314 = vmatprep.subr.bf16.mxu0 0
    %1315 = vmatpush1.bf16.msra.mxu0 %v377
    %1316 = vmatprep.subr.bf16.mxu0 0
    %1317 = vmatpush1.bf16.msra.mxu0 %v378
    %1318 = vmatprep.subr.bf16.mxu0 0
    %1319 = vmatpush1.bf16.msra.mxu0 0
    %1320 = vmatprep.subr.bf16.mxu0 0
    %1321 = vmatpush1.bf16.msra.mxu0 0
    %1322 = vmatprep.subr.bf16.mxu0 0
    %1323 = vmatpush1.bf16.msra.mxu0 0
    %1324 = vmatprep.subr.bf16.mxu0 0
    %1325 = vmatpush1.bf16.msra.mxu0 0
    %1326 = vmatprep.subr.bf16.mxu0 0
    %1327 = vmatpush1.bf16.msra.mxu0 0
    %1328 = vmatprep.subr.bf16.mxu0 0
    %1329 = vmatpush1.bf16.msra.mxu0 0
    %1330 = vmatprep.subr.bf16.mxu0 0
    %1331 = vmatpush1.bf16.msra.mxu0 0
    %1332 = vmatprep.subr.bf16.mxu0 0
    %1333 = vmatpush1.bf16.msra.mxu0 0
    %1334 = vmatprep.subr.bf16.mxu0 0
    %1335 = vmatpush1.bf16.msra.mxu0 0
    %1336 = vmatprep.subr.bf16.mxu0 0
    %1337 = vmatpush1.bf16.msra.mxu0 0
    %1338 = vmatprep.subr.bf16.mxu0 0
    %1339 = vmatpush1.bf16.msra.mxu0 0
    %1340 = vmatprep.subr.bf16.mxu0 0
    %1341 = vmatpush1.bf16.msra.mxu0 0
    %1342 = vmatprep.subr.bf16.mxu0 0
    %1343 = vmatpush1.bf16.msra.mxu0 0
    %1344 = vmatprep.subr.bf16.mxu0 0
    %1345 = vmatpush1.bf16.msra.mxu0 0
    %1346 = vmatprep.mubr.bf16.mxu0 0
    %1347 = vmatmul.mubr.bf16.gmra.mrb[0].mxu0 %v1312
    %v1348 = vpop.f32.mrb[0].mxu0
    %v1349 = vadd.f32 %v1235, %v1348
    %v1350 = vpop.f32.mrb[0].mxu0
    %v1351 = vpop.f32.mrb[0].mxu0
    %v1352 = vpop.f32.mrb[0].mxu0
    %1353 = vdwg.mxu0
    %v1354 = vadd.f32 %v1349, %v230
    %v1355 = vxor.u32 %v1354, 2147483648
    %v1356 = vmul.f32 %v1355, 1.442695
    %v1357 = vpow.pop %v1356
    %v1358 = vadd.f32 %v1357, 1.0
    %v1359 = vrcp.pop %v1358
    %v1360 = vmul.f32 1.0, %v1359
    %v1361 = vtanh.pop %v1354
    %v1362 = vmul.f32 %v1360, %v1186
    %1364 = vrot.lane.b32.xlu0 %v1361, 64
    %v1365 = vpop.permute.xlu0 %1364
    %v1367 = vmul.f32 %v1360, %v1365
    %1369 = vrot.lane.b32.xlu0 %v1367, 32
    %v1370 = vpop.permute.xlu0 %1369
    %v1372 = vadd.f32 %v1362, %v1370
    %v1373 = vtanh.pop %v1372
    %1375 = vrot.lane.b32.xlu0 %v1373, 64
    %v1376 = vpop.permute.xlu0 %1375
    %v1378 = vmul.f32 %v1360, %v1376
    %v1379 = vpack.c.bf16 %v1378, %v1378
    %1381 = vrot.lane.b32.xlu0 %v1379, 32
    %v1382 = vpop.permute.xlu0 %1381
    %v1384 = vsel %vm60, %v1382, 0
    %1386 = vmatprep.subr.bf16.mxu0 0
    %1387 = vmatpush1.bf16.msra.mxu0 %v240
    %1388 = vmatprep.subr.bf16.mxu0 0
    %1389 = vmatpush1.bf16.msra.mxu0 %v241
    %1390 = vmatprep.subr.bf16.mxu0 0
    %1391 = vmatpush1.bf16.msra.mxu0 0
    %1392 = vmatprep.subr.bf16.mxu0 0
    %1393 = vmatpush1.bf16.msra.mxu0 0
    %1394 = vmatprep.subr.bf16.mxu0 0
    %1395 = vmatpush1.bf16.msra.mxu0 0
    %1396 = vmatprep.subr.bf16.mxu0 0
    %1397 = vmatpush1.bf16.msra.mxu0 0
    %1398 = vmatprep.subr.bf16.mxu0 0
    %1399 = vmatpush1.bf16.msra.mxu0 0
    %1400 = vmatprep.subr.bf16.mxu0 0
    %1401 = vmatpush1.bf16.msra.mxu0 0
    %1402 = vmatprep.subr.bf16.mxu0 0
    %1403 = vmatpush1.bf16.msra.mxu0 0
    %1404 = vmatprep.subr.bf16.mxu0 0
    %1405 = vmatpush1.bf16.msra.mxu0 0
    %1406 = vmatprep.subr.bf16.mxu0 0
    %1407 = vmatpush1.bf16.msra.mxu0 0
    %1408 = vmatprep.subr.bf16.mxu0 0
    %1409 = vmatpush1.bf16.msra.mxu0 0
    %1410 = vmatprep.subr.bf16.mxu0 0
    %1411 = vmatpush1.bf16.msra.mxu0 0
    %1412 = vmatprep.subr.bf16.mxu0 0
    %1413 = vmatpush1.bf16.msra.mxu0 0
    %1414 = vmatprep.subr.bf16.mxu0 0
    %1415 = vmatpush1.bf16.msra.mxu0 0
    %1416 = vmatprep.subr.bf16.mxu0 0
    %1417 = vmatpush1.bf16.msra.mxu0 0
    %1418 = vmatprep.mubr.bf16.mxu0 0
    %1419 = vmatmul.mubr.bf16.gmra.mrb[0].mxu0 %v1384
    %v1420 = vpop.f32.mrb[0].mxu0
    %v1421 = vadd.f32 0.0, %v1420
    %v1422 = vpop.f32.mrb[0].mxu0
    %v1423 = vpop.f32.mrb[0].mxu0
    %v1424 = vpop.f32.mrb[0].mxu0
    %1425 = vdwg.mxu0
    %s1426 = scalar_lea.vmem [#allocation2], 48
    %v1427 = vld [vmem:[%s1426] sm:$0xff]
    %1428 = vmatprep.subr.bf16.mxu0 0
    %1429 = vmatpush1.bf16.msra.mxu0 %v296
    %1430 = vmatprep.subr.bf16.mxu0 0
    %1431 = vmatpush1.bf16.msra.mxu0 %v297
    %1432 = vmatprep.subr.bf16.mxu0 0
    %1433 = vmatpush1.bf16.msra.mxu0 0
    %1434 = vmatprep.subr.bf16.mxu0 0
    %1435 = vmatpush1.bf16.msra.mxu0 0
    %1436 = vmatprep.subr.bf16.mxu0 0
    %1437 = vmatpush1.bf16.msra.mxu0 0
    %1438 = vmatprep.subr.bf16.mxu0 0
    %1439 = vmatpush1.bf16.msra.mxu0 0
    %1440 = vmatprep.subr.bf16.mxu0 0
    %1441 = vmatpush1.bf16.msra.mxu0 0
    %1442 = vmatprep.subr.bf16.mxu0 0
    %1443 = vmatpush1.bf16.msra.mxu0 0
    %1444 = vmatprep.subr.bf16.mxu0 0
    %1445 = vmatpush1.bf16.msra.mxu0 0
    %1446 = vmatprep.subr.bf16.mxu0 0
    %1447 = vmatpush1.bf16.msra.mxu0 0
    %1448 = vmatprep.subr.bf16.mxu0 0
    %1449 = vmatpush1.bf16.msra.mxu0 0
    %1450 = vmatprep.subr.bf16.mxu0 0
    %1451 = vmatpush1.bf16.msra.mxu0 0
    %1452 = vmatprep.subr.bf16.mxu0 0
    %1453 = vmatpush1.bf16.msra.mxu0 0
    %1454 = vmatprep.subr.bf16.mxu0 0
    %1455 = vmatpush1.bf16.msra.mxu0 0
    %1456 = vmatprep.subr.bf16.mxu0 0
    %1457 = vmatpush1.bf16.msra.mxu0 0
    %1458 = vmatprep.subr.bf16.mxu0 0
    %1459 = vmatpush1.bf16.msra.mxu0 0
    %1460 = vmatprep.mubr.bf16.mxu0 0
    %1461 = vmatmul.mubr.bf16.gmra.mrb[0].mxu0 %v1312
    %v1462 = vpop.f32.mrb[0].mxu0
    %v1463 = vadd.f32 0.0, %v1462
    %v1464 = vpop.f32.mrb[0].mxu0
    %v1465 = vpop.f32.mrb[0].mxu0
    %v1466 = vpop.f32.mrb[0].mxu0
    %1467 = vdwg.mxu0
    %v1468 = vadd.f32 %v1427, %v1463
    %v1469 = vxor.u32 %v1468, 2147483648
    %v1470 = vmul.f32 %v1469, 1.442695
    %v1471 = vpow.pop %v1470
    %v1472 = vadd.f32 %v1471, 1.0
    %v1473 = vrcp.pop %v1472
    %v1474 = vmul.f32 1.0, %v1473
    %v1475 = vtanh.pop %v1468
    %v1476 = vmul.f32 %v1474, %v1300
    %1478 = vrot.lane.b32.xlu0 %v1475, 64
    %v1479 = vpop.permute.xlu0 %1478
    %v1481 = vmul.f32 %v1474, %v1479
    %1483 = vrot.lane.b32.xlu0 %v1481, 32
    %v1484 = vpop.permute.xlu0 %1483
    %v1486 = vadd.f32 %v1476, %v1484
    %v1487 = vtanh.pop %v1486
    %1489 = vrot.lane.b32.xlu0 %v1487, 64
    %v1490 = vpop.permute.xlu0 %1489
    %v1492 = vmul.f32 %v1474, %v1490
    %v1493 = vpack.c.bf16 %v1492, %v1492
    %1495 = vrot.lane.b32.xlu0 %v1493, 32
    %v1496 = vpop.permute.xlu0 %1495
    %v1498 = vsel %vm60, %v1496, 0
    %1500 = vmatprep.subr.bf16.mxu0 0
    %1501 = vmatpush1.bf16.msra.mxu0 %v377
    %1502 = vmatprep.subr.bf16.mxu0 0
    %1503 = vmatpush1.bf16.msra.mxu0 %v378
    %1504 = vmatprep.subr.bf16.mxu0 0
    %1505 = vmatpush1.bf16.msra.mxu0 0
    %1506 = vmatprep.subr.bf16.mxu0 0
    %1507 = vmatpush1.bf16.msra.mxu0 0
    %1508 = vmatprep.subr.bf16.mxu0 0
    %1509 = vmatpush1.bf16.msra.mxu0 0
    %1510 = vmatprep.subr.bf16.mxu0 0
    %1511 = vmatpush1.bf16.msra.mxu0 0
    %1512 = vmatprep.subr.bf16.mxu0 0
    %1513 = vmatpush1.bf16.msra.mxu0 0
    %1514 = vmatprep.subr.bf16.mxu0 0
    %1515 = vmatpush1.bf16.msra.mxu0 0
    %1516 = vmatprep.subr.bf16.mxu0 0
    %1517 = vmatpush1.bf16.msra.mxu0 0
    %1518 = vmatprep.subr.bf16.mxu0 0
    %1519 = vmatpush1.bf16.msra.mxu0 0
    %1520 = vmatprep.subr.bf16.mxu0 0
    %1521 = vmatpush1.bf16.msra.mxu0 0
    %1522 = vmatprep.subr.bf16.mxu0 0
    %1523 = vmatpush1.bf16.msra.mxu0 0
    %1524 = vmatprep.subr.bf16.mxu0 0
    %1525 = vmatpush1.bf16.msra.mxu0 0
    %1526 = vmatprep.subr.bf16.mxu0 0
    %1527 = vmatpush1.bf16.msra.mxu0 0
    %1528 = vmatprep.subr.bf16.mxu0 0
    %1529 = vmatpush1.bf16.msra.mxu0 0
    %1530 = vmatprep.subr.bf16.mxu0 0
    %1531 = vmatpush1.bf16.msra.mxu0 0
    %1532 = vmatprep.mubr.bf16.mxu0 0
    %1533 = vmatmul.mubr.bf16.gmra.mrb[0].mxu0 %v1498
    %v1534 = vpop.f32.mrb[0].mxu0
    %v1535 = vadd.f32 %v1421, %v1534
    %v1536 = vpop.f32.mrb[0].mxu0
    %v1537 = vpop.f32.mrb[0].mxu0
    %v1538 = vpop.f32.mrb[0].mxu0
    %1539 = vdwg.mxu0
    %v1540 = vadd.f32 %v1535, %v230
    %v1541 = vxor.u32 %v1540, 2147483648
    %v1542 = vmul.f32 %v1541, 1.442695
    %v1543 = vpow.pop %v1542
    %v1544 = vadd.f32 %v1543, 1.0
    %v1545 = vrcp.pop %v1544
    %v1546 = vmul.f32 1.0, %v1545
    %v1547 = vtanh.pop %v1540
    %v1548 = vmul.f32 %v1546, %v1372
    %1550 = vrot.lane.b32.xlu0 %v1547, 64
    %v1551 = vpop.permute.xlu0 %1550
    %v1553 = vmul.f32 %v1546, %v1551
    %1555 = vrot.lane.b32.xlu0 %v1553, 32
    %v1556 = vpop.permute.xlu0 %1555
    %v1558 = vadd.f32 %v1548, %v1556
    %v1559 = vtanh.pop %v1558
    %1561 = vrot.lane.b32.xlu0 %v1559, 64
    %v1562 = vpop.permute.xlu0 %1561
    %v1564 = vmul.f32 %v1546, %v1562
    %v1565 = vpack.c.bf16 %v1564, %v1564
    %1567 = vrot.lane.b32.xlu0 %v1565, 32
    %v1568 = vpop.permute.xlu0 %1567
    %v1570 = vsel %vm60, %v1568, 0
    %1572 = vmatprep.subr.bf16.mxu0 0
    %1573 = vmatpush1.bf16.msra.mxu0 %v240
    %1574 = vmatprep.subr.bf16.mxu0 0
    %1575 = vmatpush1.bf16.msra.mxu0 %v241
    %1576 = vmatprep.subr.bf16.mxu0 0
    %1577 = vmatpush1.bf16.msra.mxu0 0
    %1578 = vmatprep.subr.bf16.mxu0 0
    %1579 = vmatpush1.bf16.msra.mxu0 0
    %1580 = vmatprep.subr.bf16.mxu0 0
    %1581 = vmatpush1.bf16.msra.mxu0 0
    %1582 = vmatprep.subr.bf16.mxu0 0
    %1583 = vmatpush1.bf16.msra.mxu0 0
    %1584 = vmatprep.subr.bf16.mxu0 0
    %1585 = vmatpush1.bf16.msra.mxu0 0
    %1586 = vmatprep.subr.bf16.mxu0 0
    %1587 = vmatpush1.bf16.msra.mxu0 0
    %1588 = vmatprep.subr.bf16.mxu0 0
    %1589 = vmatpush1.bf16.msra.mxu0 0
    %1590 = vmatprep.subr.bf16.mxu0 0
    %1591 = vmatpush1.bf16.msra.mxu0 0
    %1592 = vmatprep.subr.bf16.mxu0 0
    %1593 = vmatpush1.bf16.msra.mxu0 0
    %1594 = vmatprep.subr.bf16.mxu0 0
    %1595 = vmatpush1.bf16.msra.mxu0 0
    %1596 = vmatprep.subr.bf16.mxu0 0
    %1597 = vmatpush1.bf16.msra.mxu0 0
    %1598 = vmatprep.subr.bf16.mxu0 0
    %1599 = vmatpush1.bf16.msra.mxu0 0
    %1600 = vmatprep.subr.bf16.mxu0 0
    %1601 = vmatpush1.bf16.msra.mxu0 0
    %1602 = vmatprep.subr.bf16.mxu0 0
    %1603 = vmatpush1.bf16.msra.mxu0 0
    %1604 = vmatprep.mubr.bf16.mxu0 0
    %1605 = vmatmul.mubr.bf16.gmra.mrb[0].mxu0 %v1570
    %v1606 = vpop.f32.mrb[0].mxu0
    %v1607 = vadd.f32 0.0, %v1606
    %v1608 = vpop.f32.mrb[0].mxu0
    %v1609 = vpop.f32.mrb[0].mxu0
    %v1610 = vpop.f32.mrb[0].mxu0
    %1611 = vdwg.mxu0
    %s1612 = scalar_lea.vmem [#allocation2], 56
    %v1613 = vld [vmem:[%s1612] sm:$0xff]
    %1614 = vmatprep.subr.bf16.mxu0 0
    %1615 = vmatpush1.bf16.msra.mxu0 %v296
    %1616 = vmatprep.subr.bf16.mxu0 0
    %1617 = vmatpush1.bf16.msra.mxu0 %v297
    %1618 = vmatprep.subr.bf16.mxu0 0
    %1619 = vmatpush1.bf16.msra.mxu0 0
    %1620 = vmatprep.subr.bf16.mxu0 0
    %1621 = vmatpush1.bf16.msra.mxu0 0
    %1622 = vmatprep.subr.bf16.mxu0 0
    %1623 = vmatpush1.bf16.msra.mxu0 0
    %1624 = vmatprep.subr.bf16.mxu0 0
    %1625 = vmatpush1.bf16.msra.mxu0 0
    %1626 = vmatprep.subr.bf16.mxu0 0
    %1627 = vmatpush1.bf16.msra.mxu0 0
    %1628 = vmatprep.subr.bf16.mxu0 0
    %1629 = vmatpush1.bf16.msra.mxu0 0
    %1630 = vmatprep.subr.bf16.mxu0 0
    %1631 = vmatpush1.bf16.msra.mxu0 0
    %1632 = vmatprep.subr.bf16.mxu0 0
    %1633 = vmatpush1.bf16.msra.mxu0 0
    %1634 = vmatprep.subr.bf16.mxu0 0
    %1635 = vmatpush1.bf16.msra.mxu0 0
    %1636 = vmatprep.subr.bf16.mxu0 0
    %1637 = vmatpush1.bf16.msra.mxu0 0
    %1638 = vmatprep.subr.bf16.mxu0 0
    %1639 = vmatpush1.bf16.msra.mxu0 0
    %1640 = vmatprep.subr.bf16.mxu0 0
    %1641 = vmatpush1.bf16.msra.mxu0 0
    %1642 = vmatprep.subr.bf16.mxu0 0
    %1643 = vmatpush1.bf16.msra.mxu0 0
    %1644 = vmatprep.subr.bf16.mxu0 0
    %1645 = vmatpush1.bf16.msra.mxu0 0
    %1646 = vmatprep.mubr.bf16.mxu0 0
    %1647 = vmatmul.mubr.bf16.gmra.mrb[0].mxu0 %v1498
    %v1648 = vpop.f32.mrb[0].mxu0
    %v1649 = vadd.f32 0.0, %v1648
    %v1650 = vpop.f32.mrb[0].mxu0
    %v1651 = vpop.f32.mrb[0].mxu0
    %v1652 = vpop.f32.mrb[0].mxu0
    %1653 = vdwg.mxu0
    %v1654 = vadd.f32 %v1613, %v1649
    %v1655 = vxor.u32 %v1654, 2147483648
    %v1656 = vmul.f32 %v1655, 1.442695
    %v1657 = vpow.pop %v1656
    %v1658 = vadd.f32 %v1657, 1.0
    %v1659 = vrcp.pop %v1658
    %v1660 = vmul.f32 1.0, %v1659
    %v1661 = vtanh.pop %v1654
    %v1662 = vmul.f32 %v1660, %v1486
    %1664 = vrot.lane.b32.xlu0 %v1661, 64
    %v1665 = vpop.permute.xlu0 %1664
    %v1667 = vmul.f32 %v1660, %v1665
    %1669 = vrot.lane.b32.xlu0 %v1667, 32
    %v1670 = vpop.permute.xlu0 %1669
    %v1672 = vadd.f32 %v1662, %v1670
    %v1673 = vtanh.pop %v1672
    %1675 = vrot.lane.b32.xlu0 %v1673, 64
    %v1676 = vpop.permute.xlu0 %1675
    %v1678 = vmul.f32 %v1660, %v1676
    %v1679 = vpack.c.bf16 %v1678, %v1678
    %1681 = vrot.lane.b32.xlu0 %v1679, 32
    %v1682 = vpop.permute.xlu0 %1681
    %v1684 = vsel %vm60, %v1682, 0
    %1686 = vmatprep.subr.bf16.mxu0 0
    %1687 = vmatpush1.bf16.msra.mxu0 %v377
    %1688 = vmatprep.subr.bf16.mxu0 0
    %1689 = vmatpush1.bf16.msra.mxu0 %v378
    %1690 = vmatprep.subr.bf16.mxu0 0
    %1691 = vmatpush1.bf16.msra.mxu0 0
    %1692 = vmatprep.subr.bf16.mxu0 0
    %1693 = vmatpush1.bf16.msra.mxu0 0
    %1694 = vmatprep.subr.bf16.mxu0 0
    %1695 = vmatpush1.bf16.msra.mxu0 0
    %1696 = vmatprep.subr.bf16.mxu0 0
    %1697 = vmatpush1.bf16.msra.mxu0 0
    %1698 = vmatprep.subr.bf16.mxu0 0
    %1699 = vmatpush1.bf16.msra.mxu0 0
    %1700 = vmatprep.subr.bf16.mxu0 0
    %1701 = vmatpush1.bf16.msra.mxu0 0
    %1702 = vmatprep.subr.bf16.mxu0 0
    %1703 = vmatpush1.bf16.msra.mxu0 0
    %1704 = vmatprep.subr.bf16.mxu0 0
    %1705 = vmatpush1.bf16.msra.mxu0 0
    %1706 = vmatprep.subr.bf16.mxu0 0
    %1707 = vmatpush1.bf16.msra.mxu0 0
    %1708 = vmatprep.subr.bf16.mxu0 0
    %1709 = vmatpush1.bf16.msra.mxu0 0
    %1710 = vmatprep.subr.bf16.mxu0 0
    %1711 = vmatpush1.bf16.msra.mxu0 0
    %1712 = vmatprep.subr.bf16.mxu0 0
    %1713 = vmatpush1.bf16.msra.mxu0 0
    %1714 = vmatprep.subr.bf16.mxu0 0
    %1715 = vmatpush1.bf16.msra.mxu0 0
    %1716 = vmatprep.subr.bf16.mxu0 0
    %1717 = vmatpush1.bf16.msra.mxu0 0
    %1718 = vmatprep.mubr.bf16.mxu0 0
    %1719 = vmatmul.mubr.bf16.gmra.mrb[0].mxu0 %v1684
    %v1720 = vpop.f32.mrb[0].mxu0
    %v1721 = vadd.f32 %v1607, %v1720
    %v1722 = vpop.f32.mrb[0].mxu0
    %v1723 = vpop.f32.mrb[0].mxu0
    %v1724 = vpop.f32.mrb[0].mxu0
    %1725 = vdwg.mxu0
    %v1726 = vadd.f32 %v1721, %v230
    %v1727 = vxor.u32 %v1726, 2147483648
    %v1728 = vmul.f32 %v1727, 1.442695
    %v1729 = vpow.pop %v1728
    %v1730 = vadd.f32 %v1729, 1.0
    %v1731 = vrcp.pop %v1730
    %v1732 = vmul.f32 1.0, %v1731
    %v1733 = vtanh.pop %v1726
    %v1734 = vmul.f32 %v1732, %v1558
    %1736 = vrot.lane.b32.xlu0 %v1733, 64
    %v1737 = vpop.permute.xlu0 %1736
    %v1739 = vmul.f32 %v1732, %v1737
    %1741 = vrot.lane.b32.xlu0 %v1739, 32
    %v1742 = vpop.permute.xlu0 %1741
    %v1744 = vadd.f32 %v1734, %v1742
    %v1745 = vtanh.pop %v1744
    %1747 = vrot.lane.b32.xlu0 %v1745, 64
    %v1748 = vpop.permute.xlu0 %1747
    %v1750 = vmul.f32 %v1732, %v1748
    %1752 = vrot.lane.b32.xlu0 %v448, 32
    %v1753 = vpop.permute.xlu0 %1752
    %1756 = vrot.lane.b32.xlu0 %v634, 64
    %v1757 = vpop.permute.xlu0 %1756
    %1760 = vrot.lane.b32.xlu0 %v820, 96
    %v1761 = vpop.permute.xlu0 %1760
    %1764 = vrot.lane.b32.xlu0 %v1192, 32
    %v1765 = vpop.permute.xlu0 %1764
    %1768 = vrot.lane.b32.xlu0 %v1378, 64
    %v1769 = vpop.permute.xlu0 %1768
    %1772 = vrot.lane.b32.xlu0 %v1564, 96
    %v1773 = vpop.permute.xlu0 %1772
    %v1775 = vsel %vm60, %v1753, %v1757
    %vm1776 = vcmask 523264
    %v1777 = vsel %vm1776, %v1775, %v1761
    %vm1778 = vcmask 785408
    %v1779 = vsel %vm1778, %v1777, %v1006
    %v1780 = vsel %vm60, %v1765, %v1769
    %v1781 = vsel %vm1776, %v1780, %v1773
    %v1782 = vsel %vm1778, %v1781, %v1750
    %v1783 = vld [vmem:[#allocation3] sm:$0xff]
    %v1784 = vld [vmem:[#allocation3 + $0x8] sm:$0xff]
    %v1785 = vld [vmem:[#allocation3 + $0x10] sm:$0xff]
    %v1786 = vld [vmem:[#allocation3 + $0x18] sm:$0xff]
    %v1787 = vld [vmem:[#allocation3 + $0x20] sm:$0xff]
    %v1788 = vld [vmem:[#allocation3 + $0x28] sm:$0xff]
    %v1789 = vld [vmem:[#allocation3 + $0x30] sm:$0xff]
    %v1790 = vld [vmem:[#allocation3 + $0x38] sm:$0xff]
    %v1791 = vld [vmem:[#allocation3 + $0x40] sm:$0xff]
    %v1792 = vld [vmem:[#allocation3 + $0x48] sm:$0xff]
    %v1793 = vld [vmem:[#allocation3 + $0x50] sm:$0xff]
    %v1794 = vld [vmem:[#allocation3 + $0x58] sm:$0xff]
    %v1795 = vld [vmem:[#allocation3 + $0x60] sm:$0xff]
    %v1796 = vld [vmem:[#allocation3 + $0x68] sm:$0xff]
    %v1797 = vld [vmem:[#allocation3 + $0x70] sm:$0xff]
    %v1798 = vld [vmem:[#allocation3 + $0x78] sm:$0xff]
    %v1799 = vld [vmem:[#allocation3 + $0x80] sm:$0xff]
    %v1800 = vld [vmem:[#allocation3 + $0x88] sm:$0xff]
    %v1801 = vld [vmem:[#allocation3 + $0x90] sm:$0xff]
    %v1802 = vld [vmem:[#allocation3 + $0x98] sm:$0xff]
    %v1803 = vld [vmem:[#allocation3 + $0xa0] sm:$0xff]
    %v1804 = vld [vmem:[#allocation3 + $0xa8] sm:$0xff]
    %v1805 = vld [vmem:[#allocation3 + $0xb0] sm:$0xff]
    %v1806 = vld [vmem:[#allocation3 + $0xb8] sm:$0xff]
    %v1807 = vld [vmem:[#allocation3 + $0xc0] sm:$0xff]
    %v1808 = vld [vmem:[#allocation3 + $0xc8] sm:$0xff]
    %v1809 = vld [vmem:[#allocation3 + $0xd0] sm:$0xff]
    %v1810 = vld [vmem:[#allocation3 + $0xd8] sm:$0xff]
    %v1811 = vld [vmem:[#allocation3 + $0xe0] sm:$0xff]
    %v1812 = vld [vmem:[#allocation3 + $0xe8] sm:$0xff]
    %v1813 = vld [vmem:[#allocation3 + $0xf0] sm:$0xff]
    %v1814 = vld [vmem:[#allocation3 + $0xf8] sm:$0xff]
    %v1815 = vld [vmem:[%s8] sm:$0x1]
    %v1817 = vlaneseq
    %v1818 = vshrl.u32 %v1817, 7
    %v1819 = vsub.s32 0, %v1818
    %v1820 = vrot.slane %v1815, %v1819
    %1822 = vmatprep.subr.mxu0 0.0
    %1823 = vmatpush1.msra.mxu0 %v1783
    %1824 = vmatprep.subr.mxu0 0.0
    %1825 = vmatpush1.msra.mxu0 %v1784
    %1826 = vmatprep.subr.mxu0 0.0
    %1827 = vmatpush1.msra.mxu0 %v1785
    %1828 = vmatprep.subr.mxu0 0.0
    %1829 = vmatpush1.msra.mxu0 %v1786
    %1830 = vmatprep.subr.mxu0 0.0
    %1831 = vmatpush1.msra.mxu0 %v1787
    %1832 = vmatprep.subr.mxu0 0.0
    %1833 = vmatpush1.msra.mxu0 %v1788
    %1834 = vmatprep.subr.mxu0 0.0
    %1835 = vmatpush1.msra.mxu0 %v1789
    %1836 = vmatprep.subr.mxu0 0.0
    %1837 = vmatpush1.msra.mxu0 %v1790
    %1838 = vmatprep.subr.mxu0 0.0
    %1839 = vmatpush1.msra.mxu0 %v1791
    %1840 = vmatprep.subr.mxu0 0.0
    %1841 = vmatpush1.msra.mxu0 %v1792
    %1842 = vmatprep.subr.mxu0 0.0
    %1843 = vmatpush1.msra.mxu0 %v1793
    %1844 = vmatprep.subr.mxu0 0.0
    %1845 = vmatpush1.msra.mxu0 %v1794
    %1846 = vmatprep.subr.mxu0 0.0
    %1847 = vmatpush1.msra.mxu0 %v1795
    %1848 = vmatprep.subr.mxu0 0.0
    %1849 = vmatpush1.msra.mxu0 %v1796
    %1850 = vmatprep.subr.mxu0 0.0
    %1851 = vmatpush1.msra.mxu0 %v1797
    %1852 = vmatprep.subr.mxu0 0.0
    %1853 = vmatpush1.msra.mxu0 %v1798
    %1854 = vmatprep.subr.mxu0 0.0
    %1855 = vmatpush1.msra.mxu0 %v1799
    %1856 = vmatprep.subr.mxu0 0.0
    %1857 = vmatpush1.msra.mxu0 %v1800
    %1858 = vmatprep.subr.mxu0 0.0
    %1859 = vmatpush1.msra.mxu0 %v1801
    %1860 = vmatprep.subr.mxu0 0.0
    %1861 = vmatpush1.msra.mxu0 %v1802
    %1862 = vmatprep.subr.mxu0 0.0
    %1863 = vmatpush1.msra.mxu0 %v1803
    %1864 = vmatprep.subr.mxu0 0.0
    %1865 = vmatpush1.msra.mxu0 %v1804
    %1866 = vmatprep.subr.mxu0 0.0
    %1867 = vmatpush1.msra.mxu0 %v1805
    %1868 = vmatprep.subr.mxu0 0.0
    %1869 = vmatpush1.msra.mxu0 %v1806
    %1870 = vmatprep.subr.mxu0 0.0
    %1871 = vmatpush1.msra.mxu0 %v1807
    %1872 = vmatprep.subr.mxu0 0.0
    %1873 = vmatpush1.msra.mxu0 %v1808
    %1874 = vmatprep.subr.mxu0 0.0
    %1875 = vmatpush1.msra.mxu0 %v1809
    %1876 = vmatprep.subr.mxu0 0.0
    %1877 = vmatpush1.msra.mxu0 %v1810
    %1878 = vmatprep.subr.mxu0 0.0
    %1879 = vmatpush1.msra.mxu0 %v1811
    %1880 = vmatprep.subr.mxu0 0.0
    %1881 = vmatpush1.msra.mxu0 %v1812
    %1882 = vmatprep.subr.mxu0 0.0
    %1883 = vmatpush1.msra.mxu0 %v1813
    %1884 = vmatprep.subr.mxu0 0.0
    %1885 = vmatpush1.msra.mxu0 %v1814
    %1886 = vmatprep.mubr.f32.mxu0 %v1782
    %1887 = vmatmul.mubr.f32.gmra.mrb[0].mxu0 %v1779
    %v1888 = vpop.f32.mrb[0].mxu0
    %v1889 = vadd.f32 %v1820, %v1888
    %v1890 = vpop.f32.mrb[0].mxu0
    %1891 = vdwg.mxu0
    %1892 = vst [vmem:[#allocation6] sm:$0xff] %v1889
    // Predicated region
    $region42: #{tpu_custom_call.1} parent=1 // pred_check
      _
    $region43: #{tpu_custom_call.1} parent=1 // pred_check_branch
      %1894 = sbr.rel (0) target = $region45
    $region44: #{tpu_custom_call.1} parent=1 // pred_region
      %s1896 = ssub.s32 128, 128
      %1897 = vsyncadd [#allocation5], %s1896
      %s1899 = sshll.u32 [#allocation6], 4
      %s1900 = int_to_ptr.vmem [resolvable:$true] %s1899
      %1902 = dma.vmem_to_hbm [thread:$0]  %s1900, 128, %s9, [#allocation5]
    $region45: #{tpu_custom_call.1} parent=1 // pred_fallthru
      _
    // Predicated region
    $region46: #{tpu_custom_call.1} parent=1 // pred_check
      _
    $region47: #{tpu_custom_call.1} parent=1 // pred_check_branch
      %1904 = sbr.rel (0) target = $region49
    $region48: #{tpu_custom_call.1} parent=1 // pred_region
      %1905 = dma.done [#allocation5], 128
    $region49: #{tpu_custom_call.1} parent=1 // pred_fallthru
      _
    %1906 = vsyncpa [#allocation4], 1
    %1907 = vsyncpa [#allocation5], 1

</llo_original>
